<compile_context>
chip_gen: v7x
topology: tpu7x:2x2x1
jax: 0.10.0
libtpu: 0.0.40
codegen_flags: <defaults>
</compile_context>

<pallas_src>
import math
import functools

import jax
import jax.numpy as jnp
from jax import lax
from jax.experimental import pallas as pl
from jax.experimental.pallas import tpu as pltpu

# Module hyperparameters (from bigraam.py)
BLOCK_SIZE = 32                    # max sequence length
N_EMBD = 64
NUM_HEADS = 4
HEAD_SIZE = N_EMBD // NUM_HEADS    # 16
DROPOUT = 0.0                      # p = 0.0 -> identity


# ---------------------------------------------------------------------------
# Fused kernel: one batch element per grid step.
# ---------------------------------------------------------------------------
def _fused_mha_kernel(x_ref, wqkv_ref, wp_ref, b_ref, o_ref):
    x = x_ref[0]             # (T, C)   compute dtype (f32 or bf16)
    wqkv = wqkv_ref[...]     # (C, 3C)  compute dtype
    wp = wp_ref[...]         # (C, C)   compute dtype (already W^T)
    b = b_ref[...]           # (1, C)   f32

    T, C = x.shape
    cdt = x.dtype
    use_approx = cdt == jnp.bfloat16   # keep exact reciprocal on the strict f32 path

    # One wide QKV projection (f32 accumulation on the MXU).
    qkv = jnp.dot(x, wqkv, preferred_element_type=jnp.float32)   # (T, 3C) f32

    scale = jnp.float32(1.0 / math.sqrt(N_EMBD))   # C ** -0.5, C = n_embd (module semantics)
    row = lax.broadcasted_iota(jnp.int32, (T, T), 0)
    col = lax.broadcasted_iota(jnp.int32, (T, T), 1)
    causal = col <= row

    # Accumulate projected heads: concat(heads) @ Wp == sum_h head_h @ Wp[h*hs:(h+1)*hs, :]
    y = jnp.zeros((T, C), jnp.float32)
    for h in range(NUM_HEADS):                       # static unroll over heads
        lo = h * HEAD_SIZE
        q = qkv[:, lo:lo + HEAD_SIZE].astype(cdt)                 # (T, hs)
        k = qkv[:, C + lo:C + lo + HEAD_SIZE].astype(cdt)         # (T, hs)
        v = qkv[:, 2 * C + lo:2 * C + lo + HEAD_SIZE].astype(cdt) # (T, hs)

        # q @ k^T without materializing a transpose (contract last axes on the MXU).
        s = lax.dot_general(q, k, (((1,), (1,)), ((), ())),
                            preferred_element_type=jnp.float32) * scale   # (T, T)
        s = jnp.where(causal, s, jnp.float32(-1e30))   # finite mask value (NaN-safe)

        # numerically-stable softmax (f32); normalization folded in after e @ v.
        m = jnp.max(s, axis=-1, keepdims=True)
        e = jnp.exp(s - m)                              # (T, T) f32
        denom = jnp.sum(e, axis=-1, keepdims=True)      # (T, 1) f32

        # dropout(p=0.0) is identity.
        # TODO(synk): add stochastic dropout via pltpu.prng_* if DROPOUT > 0.
        oh = jnp.dot(e.astype(cdt), v, preferred_element_type=jnp.float32)  # (T, hs)
        oh = oh * pl.reciprocal(denom, approx=use_approx)

        wp_h = wp[lo:lo + HEAD_SIZE, :]                 # (hs, C) sublane-aligned slice
        y = y + jnp.dot(oh.astype(cdt), wp_h, preferred_element_type=jnp.float32)

    o_ref[0] = y + b         # lane-dense (T, C) store, full-width rows


# ---------------------------------------------------------------------------
# Host wrapper: one pallas_call for the whole forward.
# ---------------------------------------------------------------------------
@functools.partial(jax.jit, static_argnames=("compute_dtype",))
def multi_head_attention(x, params, compute_dtype=jnp.float32):
    """x: (B, T, C). params = (wqkv (C,3C), wp_t (C,C), bp (1,C)). Returns (B,T,C) f32."""
    wqkv, wp_t, bp = params
    B, T, C = x.shape

    xc = x.astype(compute_dtype)
    wqkv_c = wqkv.astype(compute_dtype)
    wp_c = wp_t.astype(compute_dtype)
    bp_f32 = bp.astype(jnp.float32)

    flops = B * (2 * T * C * (3 * C)                              # stacked QKV
                 + NUM_HEADS * (2 * T * T * HEAD_SIZE             # q @ k^T
                                + 2 * T * T * HEAD_SIZE           # e @ v
                                + 2 * T * HEAD_SIZE * C))         # per-head projection
    transcendentals = B * NUM_HEADS * T * T
    bytes_accessed = (xc.size * xc.dtype.itemsize
                      + wqkv_c.size * wqkv_c.dtype.itemsize
                      + wp_c.size * wp_c.dtype.itemsize
                      + bp_f32.size * 4
                      + B * T * C * 4)

    return pl.pallas_call(
        _fused_mha_kernel,
        out_shape=jax.ShapeDtypeStruct((B, T, C), jnp.float32),
        grid_spec=pltpu.PrefetchScalarGridSpec(
            num_scalar_prefetch=0,
            grid=(B,),
            in_specs=[
                pl.BlockSpec((1, T, C), lambda b: (b, 0, 0)),      # x
                pl.BlockSpec((C, 3 * C), lambda b: (0, 0)),        # Wqkv (DMA'd once)
                pl.BlockSpec((C, C), lambda b: (0, 0)),            # Wp^T
                pl.BlockSpec((1, C), lambda b: (0, 0)),            # bias
            ],
            out_specs=pl.BlockSpec((1, T, C), lambda b: (b, 0, 0)),
        ),
        compiler_params=pltpu.CompilerParams(
            dimension_semantics=("parallel",)),
        cost_estimate=pl.CostEstimate(
            flops=flops,
            transcendentals=transcendentals,
            bytes_accessed=bytes_accessed),
    )(xc, wqkv_c, wp_c, bp_f32)


# ---------------------------------------------------------------------------
# Params + pure-JAX reference (mirrors the PyTorch forward)
# ---------------------------------------------------------------------------
def init_params(key):
    """Synthetic init. Weights stored pre-transposed (in, out); QKV stacked column-wise."""
    ks = jax.random.split(key, 5)
    bound = 1.0 / math.sqrt(N_EMBD)
    u = lambda k, shape: jax.random.uniform(k, shape, jnp.float32, -bound, bound)
    wq = u(ks[0], (N_EMBD, NUM_HEADS * HEAD_SIZE))   # head h -> columns [h*hs, (h+1)*hs)
    wk = u(ks[1], (N_EMBD, NUM_HEADS * HEAD_SIZE))
    wv = u(ks[2], (N_EMBD, NUM_HEADS * HEAD_SIZE))
    wqkv = jnp.concatenate([wq, wk, wv], axis=1)     # (C, 3C) = (64, 192)
    wp_t = u(ks[3], (N_EMBD, N_EMBD))                # proj W^T: (C, C)
    bp = u(ks[4], (1, N_EMBD))
    return (wqkv, wp_t, bp)


def reference(x, params):
    wqkv, wp_t, bp = params
    B, T, C = x.shape
    outs = []
    for h in range(NUM_HEADS):
        lo = h * HEAD_SIZE
        wq = wqkv[:, lo:lo + HEAD_SIZE]
        wk = wqkv[:, C + lo:C + lo + HEAD_SIZE]
        wv = wqkv[:, 2 * C + lo:2 * C + lo + HEAD_SIZE]
        q = x @ wq
        k = x @ wk
        v = x @ wv
        wei = (q @ jnp.swapaxes(k, -1, -2)) * (C ** -0.5)
        tril = jnp.tril(jnp.ones((T, T), jnp.float32))
        wei = jnp.where(tril == 0, -jnp.inf, wei)
        wei = jax.nn.softmax(wei, axis=-1)
        outs.append(wei @ v)
    cat = jnp.concatenate(outs, axis=-1)
    return cat @ wp_t + bp


if __name__ == "__main__":
    key = jax.random.PRNGKey(0)
    k_x, k_p = jax.random.split(key)

    B, T, C = 2, BLOCK_SIZE, N_EMBD
    x = jax.random.normal(k_x, (B, T, C), jnp.float32)
    params = init_params(k_p)

    ref = reference(x, params)

    # Strict f32 path: exact module semantics.
    out = multi_head_attention(x, params)
    out = jax.block_until_ready(out)
    assert out.shape == (B, T, C)
    assert jnp.allclose(out, ref, atol=1e-4, rtol=1e-4), "f32 kernel mismatch vs reference"

    # bf16 MXU path (v6e/v7x throughput): f32 accumulation, loose tolerance.
    out_bf16 = multi_head_attention(x, params, compute_dtype=jnp.bfloat16)
    out_bf16 = jax.block_until_ready(out_bf16)
    assert jnp.allclose(out_bf16, ref, atol=5e-2, rtol=5e-2), "bf16 kernel mismatch vs reference"

    print("KERNEL_OK")
</pallas_src>

<mosaic_0001>
module attributes {stable_mosaic.version = 11 : i64} {
  func.func @_fused_mha_kernel(%arg0: i32, %arg1: memref<1x32x64xf32, #tpu.memory_space<vmem>>, %arg2: memref<64x192xf32, #tpu.memory_space<vmem>>, %arg3: memref<64x64xf32, #tpu.memory_space<vmem>>, %arg4: memref<1x64xf32, #tpu.memory_space<vmem>>, %arg5: memref<1x32x64xf32, #tpu.memory_space<vmem>>) attributes {dimension_semantics = [#tpu.dimension_semantics<parallel>], iteration_bounds = array<i64: 2>, scalar_prefetch = 0 : i64, scratch_operands = 0 : i64, tpu.core_type = #tpu.core_type<tc>, window_params = [{transform_indices = @transform_0, window_bounds = array<i64: 1, 32, 64>}, {pipeline_mode = #tpu.pipeline_mode<synchronous>, transform_indices = @transform_1, window_bounds = array<i64: 64, 192>}, {pipeline_mode = #tpu.pipeline_mode<synchronous>, transform_indices = @transform_2, window_bounds = array<i64: 64, 64>}, {pipeline_mode = #tpu.pipeline_mode<synchronous>, transform_indices = @transform_3, window_bounds = array<i64: 1, 64>}, {transform_indices = @transform_4, window_bounds = array<i64: 1, 32, 64>}]} {
    %c0 = arith.constant 0 : index
    %c0_0 = arith.constant 0 : index
    %c0_1 = arith.constant 0 : index
    %0 = vector.load %arg1[%c0, %c0_0, %c0_1] : memref<1x32x64xf32, #tpu.memory_space<vmem>>, vector<1x32x64xf32>
    %1 = vector.shape_cast %0 : vector<1x32x64xf32> to vector<32x64xf32>
    %c0_2 = arith.constant 0 : index
    %c0_3 = arith.constant 0 : index
    %2 = vector.load %arg2[%c0_2, %c0_3] : memref<64x192xf32, #tpu.memory_space<vmem>>, vector<64x192xf32>
    %c0_4 = arith.constant 0 : index
    %c0_5 = arith.constant 0 : index
    %3 = vector.load %arg3[%c0_4, %c0_5] : memref<64x64xf32, #tpu.memory_space<vmem>>, vector<64x64xf32>
    %c0_6 = arith.constant 0 : index
    %c0_7 = arith.constant 0 : index
    %4 = vector.load %arg4[%c0_6, %c0_7] : memref<1x64xf32, #tpu.memory_space<vmem>>, vector<1x64xf32>
    %cst = arith.constant dense<0.000000e+00> : vector<32x192xf32>
    %5 = tpu.matmul %1, %2, %cst {dimension_numbers = #tpu.dot_dimension_numbers<[1], [0], [0], [1], [0, 0, 1, 1], [], []>} : vector<32x64xf32>, vector<64x192xf32>, vector<32x192xf32> -> vector<32x192xf32>
    %6 = tpu.iota {dimensions = array<i32: 0>} : vector<32x32xi32>
    %7 = tpu.iota {dimensions = array<i32: 1>} : vector<32x32xi32>
    %8 = arith.cmpi sle, %7, %6 : vector<32x32xi32>
    %cst_8 = arith.constant 0.000000e+00 : f32
    %9 = vector.broadcast %cst_8 : f32 to vector<32x64xf32>
    %10 = vector.extract_strided_slice %5 {offsets = [0, 0], sizes = [32, 16], strides = [1, 1]} : vector<32x192xf32> to vector<32x16xf32>
    %11 = vector.extract_strided_slice %5 {offsets = [0, 64], sizes = [32, 16], strides = [1, 1]} : vector<32x192xf32> to vector<32x16xf32>
    %12 = vector.extract_strided_slice %5 {offsets = [0, 128], sizes = [32, 16], strides = [1, 1]} : vector<32x192xf32> to vector<32x16xf32>
    %cst_9 = arith.constant dense<0.000000e+00> : vector<32x32xf32>
    %13 = tpu.matmul %10, %11, %cst_9 {dimension_numbers = #tpu.dot_dimension_numbers<[1], [1], [0], [0], [0, 0, 1, 0], [], []>} : vector<32x16xf32>, vector<32x16xf32>, vector<32x32xf32> -> vector<32x32xf32>
    %cst_10 = arith.constant 1.250000e-01 : f32
    %14 = vector.broadcast %cst_10 : f32 to vector<32x32xf32>
    %15 = arith.mulf %13, %14 : vector<32x32xf32>
    %cst_11 = arith.constant -1.000000e+30 : f32
    %16 = vector.broadcast %cst_11 : f32 to vector<32x32xf32>
    %17 = arith.select %8, %15, %16 : vector<32x32xi1>, vector<32x32xf32>
    %cst_12 = arith.constant dense<0xFF800000> : vector<32xf32>
    %18 = vector.multi_reduction <maximumf>, %17, %cst_12 [1] : vector<32x32xf32> to vector<32xf32>
    %19 = vector.shape_cast %18 : vector<32xf32> to vector<32x1xf32>
    %20 = vector.broadcast %19 : vector<32x1xf32> to vector<32x32xf32>
    %21 = arith.subf %17, %20 : vector<32x32xf32>
    %22 = math.exp %21 : vector<32x32xf32>
    %cst_13 = arith.constant dense<0.000000e+00> : vector<32xf32>
    %23 = vector.multi_reduction <add>, %22, %cst_13 [1] : vector<32x32xf32> to vector<32xf32>
    %24 = vector.shape_cast %23 : vector<32xf32> to vector<32x1xf32>
    %cst_14 = arith.constant dense<0.000000e+00> : vector<32x16xf32>
    %25 = tpu.matmul %22, %12, %cst_14 {dimension_numbers = #tpu.dot_dimension_numbers<[1], [0], [0], [1], [0, 0, 1, 1], [], []>} : vector<32x32xf32>, vector<32x16xf32>, vector<32x16xf32> -> vector<32x16xf32>
    %26 = tpu.reciprocal %24 : vector<32x1xf32> -> vector<32x1xf32>
    %27 = vector.broadcast %26 : vector<32x1xf32> to vector<32x16xf32>
    %28 = arith.mulf %25, %27 : vector<32x16xf32>
    %29 = vector.extract_strided_slice %3 {offsets = [0, 0], sizes = [16, 64], strides = [1, 1]} : vector<64x64xf32> to vector<16x64xf32>
    %cst_15 = arith.constant dense<0.000000e+00> : vector<32x64xf32>
    %30 = tpu.matmul %28, %29, %cst_15 {dimension_numbers = #tpu.dot_dimension_numbers<[1], [0], [0], [1], [0, 0, 1, 1], [], []>} : vector<32x16xf32>, vector<16x64xf32>, vector<32x64xf32> -> vector<32x64xf32>
    %31 = arith.addf %9, %30 : vector<32x64xf32>
    %32 = vector.extract_strided_slice %5 {offsets = [0, 16], sizes = [32, 16], strides = [1, 1]} : vector<32x192xf32> to vector<32x16xf32>
    %33 = vector.extract_strided_slice %5 {offsets = [0, 80], sizes = [32, 16], strides = [1, 1]} : vector<32x192xf32> to vector<32x16xf32>
    %34 = vector.extract_strided_slice %5 {offsets = [0, 144], sizes = [32, 16], strides = [1, 1]} : vector<32x192xf32> to vector<32x16xf32>
    %cst_16 = arith.constant dense<0.000000e+00> : vector<32x32xf32>
    %35 = tpu.matmul %32, %33, %cst_16 {dimension_numbers = #tpu.dot_dimension_numbers<[1], [1], [0], [0], [0, 0, 1, 0], [], []>} : vector<32x16xf32>, vector<32x16xf32>, vector<32x32xf32> -> vector<32x32xf32>
    %cst_17 = arith.constant 1.250000e-01 : f32
    %36 = vector.broadcast %cst_17 : f32 to vector<32x32xf32>
    %37 = arith.mulf %35, %36 : vector<32x32xf32>
    %cst_18 = arith.constant -1.000000e+30 : f32
    %38 = vector.broadcast %cst_18 : f32 to vector<32x32xf32>
    %39 = arith.select %8, %37, %38 : vector<32x32xi1>, vector<32x32xf32>
    %cst_19 = arith.constant dense<0xFF800000> : vector<32xf32>
    %40 = vector.multi_reduction <maximumf>, %39, %cst_19 [1] : vector<32x32xf32> to vector<32xf32>
    %41 = vector.shape_cast %40 : vector<32xf32> to vector<32x1xf32>
    %42 = vector.broadcast %41 : vector<32x1xf32> to vector<32x32xf32>
    %43 = arith.subf %39, %42 : vector<32x32xf32>
    %44 = math.exp %43 : vector<32x32xf32>
    %cst_20 = arith.constant dense<0.000000e+00> : vector<32xf32>
    %45 = vector.multi_reduction <add>, %44, %cst_20 [1] : vector<32x32xf32> to vector<32xf32>
    %46 = vector.shape_cast %45 : vector<32xf32> to vector<32x1xf32>
    %cst_21 = arith.constant dense<0.000000e+00> : vector<32x16xf32>
    %47 = tpu.matmul %44, %34, %cst_21 {dimension_numbers = #tpu.dot_dimension_numbers<[1], [0], [0], [1], [0, 0, 1, 1], [], []>} : vector<32x32xf32>, vector<32x16xf32>, vector<32x16xf32> -> vector<32x16xf32>
    %48 = tpu.reciprocal %46 : vector<32x1xf32> -> vector<32x1xf32>
    %49 = vector.broadcast %48 : vector<32x1xf32> to vector<32x16xf32>
    %50 = arith.mulf %47, %49 : vector<32x16xf32>
    %51 = vector.extract_strided_slice %3 {offsets = [16, 0], sizes = [16, 64], strides = [1, 1]} : vector<64x64xf32> to vector<16x64xf32>
    %cst_22 = arith.constant dense<0.000000e+00> : vector<32x64xf32>
    %52 = tpu.matmul %50, %51, %cst_22 {dimension_numbers = #tpu.dot_dimension_numbers<[1], [0], [0], [1], [0, 0, 1, 1], [], []>} : vector<32x16xf32>, vector<16x64xf32>, vector<32x64xf32> -> vector<32x64xf32>
    %53 = arith.addf %31, %52 : vector<32x64xf32>
    %54 = vector.extract_strided_slice %5 {offsets = [0, 32], sizes = [32, 16], strides = [1, 1]} : vector<32x192xf32> to vector<32x16xf32>
    %55 = vector.extract_strided_slice %5 {offsets = [0, 96], sizes = [32, 16], strides = [1, 1]} : vector<32x192xf32> to vector<32x16xf32>
    %56 = vector.extract_strided_slice %5 {offsets = [0, 160], sizes = [32, 16], strides = [1, 1]} : vector<32x192xf32> to vector<32x16xf32>
    %cst_23 = arith.constant dense<0.000000e+00> : vector<32x32xf32>
    %57 = tpu.matmul %54, %55, %cst_23 {dimension_numbers = #tpu.dot_dimension_numbers<[1], [1], [0], [0], [0, 0, 1, 0], [], []>} : vector<32x16xf32>, vector<32x16xf32>, vector<32x32xf32> -> vector<32x32xf32>
    %cst_24 = arith.constant 1.250000e-01 : f32
    %58 = vector.broadcast %cst_24 : f32 to vector<32x32xf32>
    %59 = arith.mulf %57, %58 : vector<32x32xf32>
    %cst_25 = arith.constant -1.000000e+30 : f32
    %60 = vector.broadcast %cst_25 : f32 to vector<32x32xf32>
    %61 = arith.select %8, %59, %60 : vector<32x32xi1>, vector<32x32xf32>
    %cst_26 = arith.constant dense<0xFF800000> : vector<32xf32>
    %62 = vector.multi_reduction <maximumf>, %61, %cst_26 [1] : vector<32x32xf32> to vector<32xf32>
    %63 = vector.shape_cast %62 : vector<32xf32> to vector<32x1xf32>
    %64 = vector.broadcast %63 : vector<32x1xf32> to vector<32x32xf32>
    %65 = arith.subf %61, %64 : vector<32x32xf32>
    %66 = math.exp %65 : vector<32x32xf32>
    %cst_27 = arith.constant dense<0.000000e+00> : vector<32xf32>
    %67 = vector.multi_reduction <add>, %66, %cst_27 [1] : vector<32x32xf32> to vector<32xf32>
    %68 = vector.shape_cast %67 : vector<32xf32> to vector<32x1xf32>
    %cst_28 = arith.constant dense<0.000000e+00> : vector<32x16xf32>
    %69 = tpu.matmul %66, %56, %cst_28 {dimension_numbers = #tpu.dot_dimension_numbers<[1], [0], [0], [1], [0, 0, 1, 1], [], []>} : vector<32x32xf32>, vector<32x16xf32>, vector<32x16xf32> -> vector<32x16xf32>
    %70 = tpu.reciprocal %68 : vector<32x1xf32> -> vector<32x1xf32>
    %71 = vector.broadcast %70 : vector<32x1xf32> to vector<32x16xf32>
    %72 = arith.mulf %69, %71 : vector<32x16xf32>
    %73 = vector.extract_strided_slice %3 {offsets = [32, 0], sizes = [16, 64], strides = [1, 1]} : vector<64x64xf32> to vector<16x64xf32>
    %cst_29 = arith.constant dense<0.000000e+00> : vector<32x64xf32>
    %74 = tpu.matmul %72, %73, %cst_29 {dimension_numbers = #tpu.dot_dimension_numbers<[1], [0], [0], [1], [0, 0, 1, 1], [], []>} : vector<32x16xf32>, vector<16x64xf32>, vector<32x64xf32> -> vector<32x64xf32>
    %75 = arith.addf %53, %74 : vector<32x64xf32>
    %76 = vector.extract_strided_slice %5 {offsets = [0, 48], sizes = [32, 16], strides = [1, 1]} : vector<32x192xf32> to vector<32x16xf32>
    %77 = vector.extract_strided_slice %5 {offsets = [0, 112], sizes = [32, 16], strides = [1, 1]} : vector<32x192xf32> to vector<32x16xf32>
    %78 = vector.extract_strided_slice %5 {offsets = [0, 176], sizes = [32, 16], strides = [1, 1]} : vector<32x192xf32> to vector<32x16xf32>
    %cst_30 = arith.constant dense<0.000000e+00> : vector<32x32xf32>
    %79 = tpu.matmul %76, %77, %cst_30 {dimension_numbers = #tpu.dot_dimension_numbers<[1], [1], [0], [0], [0, 0, 1, 0], [], []>} : vector<32x16xf32>, vector<32x16xf32>, vector<32x32xf32> -> vector<32x32xf32>
    %cst_31 = arith.constant 1.250000e-01 : f32
    %80 = vector.broadcast %cst_31 : f32 to vector<32x32xf32>
    %81 = arith.mulf %79, %80 : vector<32x32xf32>
    %cst_32 = arith.constant -1.000000e+30 : f32
    %82 = vector.broadcast %cst_32 : f32 to vector<32x32xf32>
    %83 = arith.select %8, %81, %82 : vector<32x32xi1>, vector<32x32xf32>
    %cst_33 = arith.constant dense<0xFF800000> : vector<32xf32>
    %84 = vector.multi_reduction <maximumf>, %83, %cst_33 [1] : vector<32x32xf32> to vector<32xf32>
    %85 = vector.shape_cast %84 : vector<32xf32> to vector<32x1xf32>
    %86 = vector.broadcast %85 : vector<32x1xf32> to vector<32x32xf32>
    %87 = arith.subf %83, %86 : vector<32x32xf32>
    %88 = math.exp %87 : vector<32x32xf32>
    %cst_34 = arith.constant dense<0.000000e+00> : vector<32xf32>
    %89 = vector.multi_reduction <add>, %88, %cst_34 [1] : vector<32x32xf32> to vector<32xf32>
    %90 = vector.shape_cast %89 : vector<32xf32> to vector<32x1xf32>
    %cst_35 = arith.constant dense<0.000000e+00> : vector<32x16xf32>
    %91 = tpu.matmul %88, %78, %cst_35 {dimension_numbers = #tpu.dot_dimension_numbers<[1], [0], [0], [1], [0, 0, 1, 1], [], []>} : vector<32x32xf32>, vector<32x16xf32>, vector<32x16xf32> -> vector<32x16xf32>
    %92 = tpu.reciprocal %90 : vector<32x1xf32> -> vector<32x1xf32>
    %93 = vector.broadcast %92 : vector<32x1xf32> to vector<32x16xf32>
    %94 = arith.mulf %91, %93 : vector<32x16xf32>
    %95 = vector.extract_strided_slice %3 {offsets = [48, 0], sizes = [16, 64], strides = [1, 1]} : vector<64x64xf32> to vector<16x64xf32>
    %cst_36 = arith.constant dense<0.000000e+00> : vector<32x64xf32>
    %96 = tpu.matmul %94, %95, %cst_36 {dimension_numbers = #tpu.dot_dimension_numbers<[1], [0], [0], [1], [0, 0, 1, 1], [], []>} : vector<32x16xf32>, vector<16x64xf32>, vector<32x64xf32> -> vector<32x64xf32>
    %97 = arith.addf %75, %96 : vector<32x64xf32>
    %98 = vector.broadcast %4 : vector<1x64xf32> to vector<32x64xf32>
    %99 = arith.addf %97, %98 : vector<32x64xf32>
    %c0_37 = arith.constant 0 : index
    %c0_38 = arith.constant 0 : index
    %c0_39 = arith.constant 0 : index
    %100 = vector.load %arg5[%c0_37, %c0_38, %c0_39] : memref<1x32x64xf32, #tpu.memory_space<vmem>>, vector<1x32x64xf32>
    %101 = vector.shape_cast %100 : vector<1x32x64xf32> to vector<32x64xf32>
    %102 = vector.shape_cast %99 : vector<32x64xf32> to vector<1x32x64xf32>
    tpu.vector_store %arg5[%c0_37, %c0_38, %c0_39], %102 {strides = array<i32>} : memref<1x32x64xf32, #tpu.memory_space<vmem>>, vector<1x32x64xf32>,
    return
  }
  func.func @transform_0(%arg0: i32) -> (i32, i32, i32) {
    %c0_i32 = arith.constant 0 : i32
    %c0_i32_0 = arith.constant 0 : i32
    %c0_i32_1 = arith.constant 0 : i32
    return %arg0, %c0_i32, %c0_i32_0 : i32, i32, i32
  }
  func.func @transform_1(%arg0: i32) -> (i32, i32) {
    %c0_i32 = arith.constant 0 : i32
    %c0_i32_0 = arith.constant 0 : i32
    %c0_i32_1 = arith.constant 0 : i32
    return %c0_i32, %c0_i32_0 : i32, i32
  }
  func.func @transform_2(%arg0: i32) -> (i32, i32) {
    %c0_i32 = arith.constant 0 : i32
    %c0_i32_0 = arith.constant 0 : i32
    %c0_i32_1 = arith.constant 0 : i32
    return %c0_i32, %c0_i32_0 : i32, i32
  }
  func.func @transform_3(%arg0: i32) -> (i32, i32) {
    %c0_i32 = arith.constant 0 : i32
    %c0_i32_0 = arith.constant 0 : i32
    %c0_i32_1 = arith.constant 0 : i32
    return %c0_i32, %c0_i32_0 : i32, i32
  }
  func.func @transform_4(%arg0: i32) -> (i32, i32, i32) {
    %c0_i32 = arith.constant 0 : i32
    %c0_i32_0 = arith.constant 0 : i32
    %c0_i32_1 = arith.constant 0 : i32
    return %arg0, %c0_i32, %c0_i32_0 : i32, i32, i32
  }
}

</mosaic_0001>

<llo_original>
// kernel: multi_head_attention.1
$region0: #{multi_head_attention.1}
  #allocation0 [shape = 'u32[]', space=smem, size = 0x4, offset = 0x4, fixed_abs, tag = 'smem constant byte address 0x4 - core index']
  #allocation1 [shape = 'u32[144,128]{1,0:T(1,128)}', space=vmem, size = 0x12000, scoped, tag = 'internal scratch']
  %s0 = inlined_call_operand.hbm [shape: f32[2,32,64], index: 0, kind: input, shape index: {}]
  %s1 = inlined_call_operand.hbm [shape: f32[64,192], index: 1, kind: input, shape index: {}]
  %s2 = inlined_call_operand.hbm [shape: f32[64,64], index: 2, kind: input, shape index: {}]
  %s3 = inlined_call_operand.vmem [shape: f32[1,64], index: 3, kind: input, shape index: {}]
  %s4 = inlined_call_operand.hbm [shape: f32[2,32,64], index: 4, kind: output, shape index: {}]
  %s5 = sld [smem:[#allocation0]]
  $region61: #{multi_head_attention.1} parent=0
    _
  %s7 = ssub.s32 1, %s5
  %s8 = scalar_select 0, %s7, %s5
  $region1: #{multi_head_attention.1} parent=0
    #allocation2 [shape = 'u8[32768]{0}', space=vmem, size = 0x8000, scoped, tag = 'input window, operand 0']
    #allocation3 [shape = 's32[2]{0}', space=sflag, size = 0x8, scoped, tag = 'scoped memory for multi_head_attention.1']
    #allocation4 [shape = 's32[2]{0}', space=sflag, size = 0x8, scoped, tag = 'scoped memory for multi_head_attention.1']
    #allocation5 [shape = 'u8[65536]{0}', space=vmem, size = 0x10000, scoped, tag = 'input window, operand 1, single buffered']
    #allocation6 [shape = 's32[1]{0}', space=sflag, size = 0x4, scoped, tag = 'scoped memory for multi_head_attention.1']
    #allocation7 [shape = 'u8[32768]{0}', space=vmem, size = 0x8000, scoped, tag = 'input window, operand 2, single buffered']
    #allocation8 [shape = 'u8[32768]{0}', space=vmem, size = 0x8000, scoped, tag = 'output window, operand 0']
    %9 = vsyncpa [#allocation3], 0
    %s10 = scalar_lea.sflag [#allocation3], 1
    %11 = vsyncpa %s10, 0
    %12 = vsyncpa [#allocation6], 0
    %13 = vsyncpa [#allocation4], 0
    %s14 = scalar_lea.sflag [#allocation4], 1
    %15 = vsyncpa %s14, 0
    loop: start=0, step=1, limit=4
    $region2: #{multi_head_attention.1} parent=1 // loop_pre_header
      _
    $region3: #{multi_head_attention.1} parent=1 // loop_header
      %s17 = sphi 0, %s21
      %p18 = scmp.ge.s32.totalorder %s17, 4
      %s27 = sphi 0, %s29
      %s30 = sphi 0, %s27
      %s31 = sphi 0, %s30
      %s47 = sphi 0, %s31
      %s51 = sphi 0, %s51
      %s53 = sphi 0, %s51
      %s54 = sphi 0, %s53
      %s68 = sphi 0, %s54
      %s72 = sphi 0, %s72
      %s74 = sphi 0, %s72
      %s75 = sphi 0, %s74
      %s89 = sphi 0, %s75
      %s93 = sphi 0, %s93
      %s95 = sphi 0, %s93
      %s96 = sphi 0, %s95
      %s110 = sphi 0, %s96
      %s116 = sphi 0, %s118
      %s119 = sphi 0, %s116
      %s120 = sphi 0, %s119
      %s136 = sphi 0, %s120
    $region4: #{multi_head_attention.1} parent=1 // loop_header_branch
      %20 = sbr.rel (%p18) target = $region8
    $region5: #{multi_head_attention.1} parent=1 // loop_body
      %s22 = ssub.s32 %s17, 1
      %s23 = ssub.s32 %s17, 2
      %s24 = sadd.s32 %s17, 1
      %s25 = ssub.s32 %s17, %s24
      %p26 = scmp.eq.s32.totalorder %s25, 0
      %s28 = sadd.s32 %s27, 1
      %s29 = scalar_select %p26, %s27, %s28
      %p32 = pneg %p26
      %p33 = scmp.eq.s32.totalorder %s17, 1
      %p34 = por %p32, %p33
      %p35 = scmp.ne.s32.totalorder %s27, %s30
      %p36 = scmp.eq.s32.totalorder %s17, 0
      %p37 = por %p35, %p36
      %p38 = scmp.ne.s32.totalorder %s27, %s30
      %p39 = scmp.eq.s32.totalorder %s22, 1
      %p40 = por %p38, %p39
      %p41 = scmp.ne.s32.totalorder %s30, %s31
      %p42 = scmp.eq.s32.totalorder %s22, 0
      %p43 = por %p41, %p42
      %p44 = scmp.ne.s32.totalorder %s30, %s31
      %p45 = scmp.eq.s32.totalorder %s23, 1
      %p46 = por %p44, %p45
      %p48 = scmp.ne.s32.totalorder %s31, %s47
      %p49 = scmp.eq.s32.totalorder %s23, 0
      %p50 = por %p48, %p49
      %s52 = sadd.s32 %s51, 1
      %p55 = scmp.eq.s32.totalorder %s17, 1
      %p56 = scmp.ne.s32.totalorder %s51, %s53
      %p57 = scmp.eq.s32.totalorder %s17, 0
      %p58 = por %p56, %p57
      %p59 = scmp.ne.s32.totalorder %s51, %s53
      %p60 = scmp.eq.s32.totalorder %s22, 1
      %p61 = por %p59, %p60
      %p62 = scmp.ne.s32.totalorder %s53, %s54
      %p63 = scmp.eq.s32.totalorder %s22, 0
      %p64 = por %p62, %p63
      %p65 = scmp.ne.s32.totalorder %s53, %s54
      %p66 = scmp.eq.s32.totalorder %s23, 1
      %p67 = por %p65, %p66
      %p69 = scmp.ne.s32.totalorder %s54, %s68
      %p70 = scmp.eq.s32.totalorder %s23, 0
      %p71 = por %p69, %p70
      %s73 = sadd.s32 %s72, 1
      %p76 = scmp.eq.s32.totalorder %s17, 1
      %p77 = scmp.ne.s32.totalorder %s72, %s74
      %p78 = scmp.eq.s32.totalorder %s17, 0
      %p79 = por %p77, %p78
      %p80 = scmp.ne.s32.totalorder %s72, %s74
      %p81 = scmp.eq.s32.totalorder %s22, 1
      %p82 = por %p80, %p81
      %p83 = scmp.ne.s32.totalorder %s74, %s75
      %p84 = scmp.eq.s32.totalorder %s22, 0
      %p85 = por %p83, %p84
      %p86 = scmp.ne.s32.totalorder %s74, %s75
      %p87 = scmp.eq.s32.totalorder %s23, 1
      %p88 = por %p86, %p87
      %p90 = scmp.ne.s32.totalorder %s75, %s89
      %p91 = scmp.eq.s32.totalorder %s23, 0
      %p92 = por %p90, %p91
      %s94 = sadd.s32 %s93, 1
      %p97 = scmp.eq.s32.totalorder %s17, 1
      %p98 = scmp.ne.s32.totalorder %s93, %s95
      %p99 = scmp.eq.s32.totalorder %s17, 0
      %p100 = por %p98, %p99
      %p101 = scmp.ne.s32.totalorder %s93, %s95
      %p102 = scmp.eq.s32.totalorder %s22, 1
      %p103 = por %p101, %p102
      %p104 = scmp.ne.s32.totalorder %s95, %s96
      %p105 = scmp.eq.s32.totalorder %s22, 0
      %p106 = por %p104, %p105
      %p107 = scmp.ne.s32.totalorder %s95, %s96
      %p108 = scmp.eq.s32.totalorder %s23, 1
      %p109 = por %p107, %p108
      %p111 = scmp.ne.s32.totalorder %s96, %s110
      %p112 = scmp.eq.s32.totalorder %s23, 0
      %p113 = por %p111, %p112
      %s114 = ssub.s32 %s17, %s24
      %p115 = scmp.eq.s32.totalorder %s114, 0
      %s117 = sadd.s32 %s116, 1
      %s118 = scalar_select %p115, %s116, %s117
      %p121 = pneg %p115
      %p122 = scmp.eq.s32.totalorder %s17, 1
      %p123 = por %p121, %p122
      %p124 = scmp.ne.s32.totalorder %s116, %s119
      %p125 = scmp.eq.s32.totalorder %s17, 0
      %p126 = por %p124, %p125
      %p127 = scmp.ne.s32.totalorder %s116, %s119
      %p128 = scmp.eq.s32.totalorder %s22, 1
      %p129 = por %p127, %p128
      %p130 = scmp.ne.s32.totalorder %s119, %s120
      %p131 = scmp.eq.s32.totalorder %s22, 0
      %p132 = por %p130, %p131
      %p133 = scmp.ne.s32.totalorder %s119, %s120
      %p134 = scmp.eq.s32.totalorder %s23, 1
      %p135 = por %p133, %p134
      %p137 = scmp.ne.s32.totalorder %s120, %s136
      %p138 = scmp.eq.s32.totalorder %s23, 0
      %p139 = por %p137, %p138
      %p140 = scmp.le.s32.totalorder 1, %s17
      %p141 = scmp.lt.s32.totalorder %s17, 3
      %p142 = pnand %p140, %p141
      %p143 = pneg %p142
      // Predicated region
      $region9: #{multi_head_attention.1} parent=5 // pred_check
        _
      $region10: #{multi_head_attention.1} parent=5 // pred_check_branch
        %145 = sbr.rel (%p142) target = $region12
      $region11: #{multi_head_attention.1} parent=5 // pred_region
        %s146 = ssub.s32 %s17, 1
        // Predicated region
        $region13: #{multi_head_attention.1} parent=11 // pred_check
          %p147 = pneg %p64
        $region14: #{multi_head_attention.1} parent=11 // pred_check_branch
          %149 = sbr.rel (%p147) target = $region16
        $region15: #{multi_head_attention.1} parent=11 // pred_region
          %s151 = ssub.s32 2048, 2048
          %152 = vsyncadd [#allocation6], %s151
          %s153 = sshll.u32 [#allocation5], 4
          %s154 = int_to_ptr.vmem [resolvable:$true] %s153
          %159 = dma.hbm_to_vmem [thread:$0]  %s1, 2048, %s154, [#allocation6], 256, 256, 16
        $region16: #{multi_head_attention.1} parent=11 // pred_fallthru
          _
        // Predicated region
        $region17: #{multi_head_attention.1} parent=11 // pred_check
          %p160 = pneg %p85
        $region18: #{multi_head_attention.1} parent=11 // pred_check_branch
          %162 = sbr.rel (%p160) target = $region20
        $region19: #{multi_head_attention.1} parent=11 // pred_region
          %s164 = ssub.s32 1024, 1024
          %165 = vsyncadd [#allocation6], %s164
          %s166 = sshll.u32 [#allocation7], 4
          %s167 = int_to_ptr.vmem [resolvable:$true] %s166
          %172 = dma.hbm_to_vmem [thread:$0]  %s2, 1024, %s167, [#allocation6], 128, 128, 8
        $region20: #{multi_head_attention.1} parent=11 // pred_fallthru
          _
        // Predicated region
        $region21: #{multi_head_attention.1} parent=11 // pred_check
          %p173 = pneg %p106
        $region22: #{multi_head_attention.1} parent=11 // pred_check_branch
          %175 = sbr.rel (%p173) target = $region24
        $region23: #{multi_head_attention.1} parent=11 // pred_region
          _
        $region24: #{multi_head_attention.1} parent=11 // pred_fallthru
          _
      $region12: #{multi_head_attention.1} parent=5 // pred_fallthru
        _
      %p176 = scmp.lt.s32.totalorder %s17, 2
      // Predicated region
      $region25: #{multi_head_attention.1} parent=5 // pred_check
        %p177 = pneg %p176
      $region26: #{multi_head_attention.1} parent=5 // pred_check_branch
        %179 = sbr.rel (%p177) target = $region28
      $region27: #{multi_head_attention.1} parent=5 // pred_region
        // Predicated region
        $region29: #{multi_head_attention.1} parent=27 // pred_check
          %p180 = pneg %p37
        $region30: #{multi_head_attention.1} parent=27 // pred_check_branch
          %182 = sbr.rel (%p180) target = $region32
        $region31: #{multi_head_attention.1} parent=27 // pred_region
          %s183 = sand.u32 %s27, 1
          %s184 = scalar_lea.sflag [#allocation3], %s183
          %s185 = sand.u32 %s27, 1
          %s186 = smul.addr %s185, 32
          %s187 = scalar_lea.vmem [#allocation2], %s186
          %s189 = ssub.s32 512, 512
          %190 = vsyncadd %s184, %s189
          %s191 = smul.addr %s17, 4
          %s192 = smul.addr %s191, 128
          %s193 = scalar_lea.hbm %s0, %s192
          %s194 = sshll.u32 %s187, 4
          %s195 = int_to_ptr.vmem [resolvable:$true] %s194
          %200 = dma.hbm_to_vmem [thread:$0]  %s193, 512, %s195, %s184, 128, 128, 8
        $region32: #{multi_head_attention.1} parent=27 // pred_fallthru
          _
      $region28: #{multi_head_attention.1} parent=5 // pred_fallthru
        _
      %p201 = scmp.le.s32.totalorder 1, %s17
      %p202 = scmp.lt.s32.totalorder %s17, 3
      %p203 = pnand %p201, %p202
      %p204 = pneg %p203
      // Predicated region
      $region33: #{multi_head_attention.1} parent=5 // pred_check
        _
      $region34: #{multi_head_attention.1} parent=5 // pred_check_branch
        %206 = sbr.rel (%p203) target = $region36
      $region35: #{multi_head_attention.1} parent=5 // pred_region
        %s207 = ssub.s32 %s17, 1
        %s208 = sand.u32 %s30, 1
        %s209 = scalar_lea.sflag [#allocation3], %s208
        %s210 = sand.u32 %s30, 1
        %s211 = smul.addr %s210, 32
        %s212 = scalar_lea.vmem [#allocation2], %s211
        // Predicated region
        $region37: #{multi_head_attention.1} parent=35 // pred_check
          %p213 = pneg %p43
        $region38: #{multi_head_attention.1} parent=35 // pred_check_branch
          %215 = sbr.rel (%p213) target = $region40
        $region39: #{multi_head_attention.1} parent=35 // pred_region
          %216 = dma.done %s209, 512
        $region40: #{multi_head_attention.1} parent=35 // pred_fallthru
          _
        // Predicated region
        $region41: #{multi_head_attention.1} parent=35 // pred_check
          %p217 = pneg %p64
        $region42: #{multi_head_attention.1} parent=35 // pred_check_branch
          %219 = sbr.rel (%p217) target = $region44
        $region43: #{multi_head_attention.1} parent=35 // pred_region
          %220 = dma.done [#allocation6], 2048
        $region44: #{multi_head_attention.1} parent=35 // pred_fallthru
          _
        // Predicated region
        $region45: #{multi_head_attention.1} parent=35 // pred_check
          %p221 = pneg %p85
        $region46: #{multi_head_attention.1} parent=35 // pred_check_branch
          %223 = sbr.rel (%p221) target = $region48
        $region47: #{multi_head_attention.1} parent=35 // pred_region
          %224 = dma.done [#allocation6], 1024
        $region48: #{multi_head_attention.1} parent=35 // pred_fallthru
          _
        %s225 = sand.u32 %s30, 1
        %s226 = scalar_lea.sflag [#allocation3], %s225
        %s227 = sand.u32 %s30, 1
        %s228 = smul.addr %s227, 32
        %s229 = scalar_lea.vmem [#allocation2], %s228
        %p230 = pneg %p43
        %p231 = pneg %p40
        %p232 = pneg %p64
        %p233 = pneg %p61
        %p234 = pneg %p85
        %p235 = pneg %p82
        %p236 = pneg %p106
        %p237 = pneg %p103
        %p238 = pneg %p132
        %p239 = pneg %p129
        %s240 = sand.u32 %s119, 1
        %s241 = scalar_lea.sflag [#allocation4], %s240
        %s242 = sand.u32 %s119, 1
        %s243 = smul.addr %s242, 32
        %s244 = scalar_lea.vmem [#allocation8], %s243
        %v245 = vld [vmem:[%s212] sm:$0xff]
        %v246 = vld [vmem:[%s212 + $0x8] sm:$0xff]
        %v247 = vld [vmem:[%s212 + $0x10] sm:$0xff]
        %v248 = vld [vmem:[%s212 + $0x18] sm:$0xff]
        %v249 = vld [vmem:[#allocation5] sm:$0xff]
        %v250 = vld [vmem:[#allocation5 + $0x8] sm:$0xff]
        %v251 = vld [vmem:[#allocation5 + $0x10] sm:$0xff]
        %v252 = vld [vmem:[#allocation5 + $0x18] sm:$0xff]
        %v253 = vld [vmem:[#allocation5 + $0x20] sm:$0xff]
        %v254 = vld [vmem:[#allocation5 + $0x28] sm:$0xff]
        %v255 = vld [vmem:[#allocation5 + $0x30] sm:$0xff]
        %v256 = vld [vmem:[#allocation5 + $0x38] sm:$0xff]
        %v257 = vld [vmem:[#allocation5 + $0x40] sm:$0xff]
        %v258 = vld [vmem:[#allocation5 + $0x48] sm:$0xff]
        %v259 = vld [vmem:[#allocation5 + $0x50] sm:$0xff]
        %v260 = vld [vmem:[#allocation5 + $0x58] sm:$0xff]
        %v261 = vld [vmem:[#allocation5 + $0x60] sm:$0xff]
        %v262 = vld [vmem:[#allocation5 + $0x68] sm:$0xff]
        %v263 = vld [vmem:[#allocation5 + $0x70] sm:$0xff]
        %v264 = vld [vmem:[#allocation5 + $0x78] sm:$0xff]
        %v265 = vld [vmem:[#allocation7] sm:$0xff]
        %v266 = vld [vmem:[#allocation7 + $0x8] sm:$0xff]
        %v267 = vld [vmem:[#allocation7 + $0x10] sm:$0xff]
        %v268 = vld [vmem:[#allocation7 + $0x18] sm:$0xff]
        %v269 = vld [vmem:[#allocation7 + $0x20] sm:$0xff]
        %v270 = vld [vmem:[#allocation7 + $0x28] sm:$0xff]
        %v271 = vld [vmem:[#allocation7 + $0x30] sm:$0xff]
        %v272 = vld [vmem:[#allocation7 + $0x38] sm:$0xff]
        %v273 = vld [vmem:[%s3] sm:$0x1]
        %vm274 = vcmask 523264
        %v276 = vsel %vm274, %v245, 0
        %v279 = vsel %vm274, %v246, 0
        %v282 = vsel %vm274, %v247, 0
        %v285 = vsel %vm274, %v248, 0
        %287 = vmatprep.subr.mxu0 %v250
        %288 = vmatpush1.msra.mxu0 %v249
        %289 = vmatprep.subr.mxu0 %v252
        %290 = vmatpush1.msra.mxu0 %v251
        %291 = vmatprep.subr.mxu0 %v254
        %292 = vmatpush1.msra.mxu0 %v253
        %293 = vmatprep.subr.mxu0 %v256
        %294 = vmatpush1.msra.mxu0 %v255
        %295 = vmatprep.subr.mxu0 %v258
        %296 = vmatpush1.msra.mxu0 %v257
        %297 = vmatprep.subr.mxu0 %v260
        %298 = vmatpush1.msra.mxu0 %v259
        %299 = vmatprep.subr.mxu0 %v262
        %300 = vmatpush1.msra.mxu0 %v261
        %301 = vmatprep.subr.mxu0 %v264
        %302 = vmatpush1.msra.mxu0 %v263
        %303 = vmatprep.subr.mxu0 0.0
        %304 = vmatpush1.msra.mxu0 0.0
        %305 = vmatprep.subr.mxu0 0.0
        %306 = vmatpush1.msra.mxu0 0.0
        %307 = vmatprep.subr.mxu0 0.0
        %308 = vmatpush1.msra.mxu0 0.0
        %309 = vmatprep.subr.mxu0 0.0
        %310 = vmatpush1.msra.mxu0 0.0
        %311 = vmatprep.subr.mxu0 0.0
        %312 = vmatpush1.msra.mxu0 0.0
        %313 = vmatprep.subr.mxu0 0.0
        %314 = vmatpush1.msra.mxu0 0.0
        %315 = vmatprep.subr.mxu0 0.0
        %316 = vmatpush1.msra.mxu0 0.0
        %317 = vmatprep.subr.mxu0 0.0
        %318 = vmatpush1.msra.mxu0 0.0
        %319 = vmatprep.subr.mxu0 0.0
        %320 = vmatpush1.msra.mxu0 0.0
        %321 = vmatprep.subr.mxu0 0.0
        %322 = vmatpush1.msra.mxu0 0.0
        %323 = vmatprep.subr.mxu0 0.0
        %324 = vmatpush1.msra.mxu0 0.0
        %325 = vmatprep.subr.mxu0 0.0
        %326 = vmatpush1.msra.mxu0 0.0
        %327 = vmatprep.subr.mxu0 0.0
        %328 = vmatpush1.msra.mxu0 0.0
        %329 = vmatprep.subr.mxu0 0.0
        %330 = vmatpush1.msra.mxu0 0.0
        %331 = vmatprep.subr.mxu0 0.0
        %332 = vmatpush1.msra.mxu0 0.0
        %333 = vmatprep.subr.mxu0 0.0
        %334 = vmatpush1.msra.mxu0 0.0
        %335 = vmatprep.subr.mxu0 0.0
        %336 = vmatpush1.msra.mxu0 0.0
        %337 = vmatprep.subr.mxu0 0.0
        %338 = vmatpush1.msra.mxu0 0.0
        %339 = vmatprep.subr.mxu0 0.0
        %340 = vmatpush1.msra.mxu0 0.0
        %341 = vmatprep.subr.mxu0 0.0
        %342 = vmatpush1.msra.mxu0 0.0
        %343 = vmatprep.subr.mxu0 0.0
        %344 = vmatpush1.msra.mxu0 0.0
        %345 = vmatprep.subr.mxu0 0.0
        %346 = vmatpush1.msra.mxu0 0.0
        %347 = vmatprep.subr.mxu0 0.0
        %348 = vmatpush1.msra.mxu0 0.0
        %349 = vmatprep.subr.mxu0 0.0
        %350 = vmatpush1.msra.mxu0 0.0
        %351 = vmatprep.mubr.f32.mxu0 0.0
        %352 = vmatmul.mubr.f32.gmra.mrb[0].mxu0 %v276
        %v353 = vpop.f32.mrb[0].mxu0
        %v354 = vadd.f32 0.0, %v353
        %v355 = vpop.f32.mrb[0].mxu0
        %v356 = vadd.f32 0.0, %v355
        %357 = vmatprep.mubr.f32.mxu0 0.0
        %358 = vmatmul.mubr.f32.gmra.mrb[0].mxu0 %v279
        %v359 = vpop.f32.mrb[0].mxu0
        %v360 = vadd.f32 0.0, %v359
        %v361 = vpop.f32.mrb[0].mxu0
        %v362 = vadd.f32 0.0, %v361
        %363 = vmatprep.mubr.f32.mxu0 0.0
        %364 = vmatmul.mubr.f32.gmra.mrb[0].mxu0 %v282
        %v365 = vpop.f32.mrb[0].mxu0
        %v366 = vadd.f32 0.0, %v365
        %v367 = vpop.f32.mrb[0].mxu0
        %v368 = vadd.f32 0.0, %v367
        %369 = vmatprep.mubr.f32.mxu0 0.0
        %370 = vmatmul.mubr.f32.gmra.mrb[0].mxu0 %v285
        %v371 = vpop.f32.mrb[0].mxu0
        %v372 = vadd.f32 0.0, %v371
        %v373 = vpop.f32.mrb[0].mxu0
        %v374 = vadd.f32 0.0, %v373
        %375 = vdwg.mxu0
        %v376 = vlaneseq
        %v377 = vshrl.u32 %v376, 7
        %v378 = vadd.s32 %v377, 8
        %v379 = vadd.s32 %v377, 16
        %v380 = vadd.s32 %v377, 24
        %v381 = vlaneseq
        %v382 = vand.u32 %v381, 127
        %vm383 = vcmp.le.s32.totalorder %v382, %v377
        %vm384 = vcmp.le.s32.totalorder %v382, %v378
        %vm385 = vcmp.le.s32.totalorder %v382, %v379
        %vm386 = vcmp.le.s32.totalorder %v382, %v380
        %391 = vrot.lane.b32.xlu0 %v354, 64
        %v392 = vpop.permute.xlu0 %391
        %393 = vrot.lane.b32.xlu0 %v360, 64
        %v394 = vpop.permute.xlu0 %393
        %395 = vrot.lane.b32.xlu0 %v366, 64
        %v396 = vpop.permute.xlu0 %395
        %397 = vrot.lane.b32.xlu0 %v372, 64
        %v398 = vpop.permute.xlu0 %397
        %vm399 = vcmask 130048
        %v400 = vsel %vm399, %v354, 0
        %v402 = vsel %vm399, %v360, 0
        %v404 = vsel %vm399, %v366, 0
        %v406 = vsel %vm399, %v372, 0
        %v408 = vsel %vm399, %v392, 0
        %v410 = vsel %vm399, %v394, 0
        %v412 = vsel %vm399, %v396, 0
        %v414 = vsel %vm399, %v398, 0
        %416 = vmatprep.subr.mxu0 0.0
        %417 = vmatpush1.xpose.msra.mxu0 %v408
        %418 = vmatprep.subr.mxu0 0.0
        %419 = vmatpush1.xpose.msra.mxu0 %v410
        %420 = vmatprep.subr.mxu0 0.0
        %421 = vmatpush1.xpose.msra.mxu0 %v412
        %422 = vmatprep.subr.mxu0 0.0
        %423 = vmatpush1.xpose.msra.mxu0 %v414
        %424 = vmatprep.subr.mxu0 0.0
        %425 = vmatpush1.xpose.msra.mxu0 0.0
        %426 = vmatprep.subr.mxu0 0.0
        %427 = vmatpush1.xpose.msra.mxu0 0.0
        %428 = vmatprep.subr.mxu0 0.0
        %429 = vmatpush1.xpose.msra.mxu0 0.0
        %430 = vmatprep.subr.mxu0 0.0
        %431 = vmatpush1.xpose.msra.mxu0 0.0
        %432 = vmatprep.subr.mxu0 0.0
        %433 = vmatpush1.xpose.msra.mxu0 0.0
        %434 = vmatprep.subr.mxu0 0.0
        %435 = vmatpush1.xpose.msra.mxu0 0.0
        %436 = vmatprep.subr.mxu0 0.0
        %437 = vmatpush1.xpose.msra.mxu0 0.0
        %438 = vmatprep.subr.mxu0 0.0
        %439 = vmatpush1.xpose.msra.mxu0 0.0
        %440 = vmatprep.subr.mxu0 0.0
        %441 = vmatpush1.xpose.msra.mxu0 0.0
        %442 = vmatprep.subr.mxu0 0.0
        %443 = vmatpush1.xpose.msra.mxu0 0.0
        %444 = vmatprep.subr.mxu0 0.0
        %445 = vmatpush1.xpose.msra.mxu0 0.0
        %446 = vmatprep.subr.mxu0 0.0
        %447 = vmatpush1.xpose.msra.mxu0 0.0
        %448 = vmatprep.subr.mxu0 0.0
        %449 = vmatpush1.xpose.msra.mxu0 0.0
        %450 = vmatprep.subr.mxu0 0.0
        %451 = vmatpush1.xpose.msra.mxu0 0.0
        %452 = vmatprep.subr.mxu0 0.0
        %453 = vmatpush1.xpose.msra.mxu0 0.0
        %454 = vmatprep.subr.mxu0 0.0
        %455 = vmatpush1.xpose.msra.mxu0 0.0
        %456 = vmatprep.subr.mxu0 0.0
        %457 = vmatpush1.xpose.msra.mxu0 0.0
        %458 = vmatprep.subr.mxu0 0.0
        %459 = vmatpush1.xpose.msra.mxu0 0.0
        %460 = vmatprep.subr.mxu0 0.0
        %461 = vmatpush1.xpose.msra.mxu0 0.0
        %462 = vmatprep.subr.mxu0 0.0
        %463 = vmatpush1.xpose.msra.mxu0 0.0
        %464 = vmatprep.subr.mxu0 0.0
        %465 = vmatpush1.xpose.msra.mxu0 0.0
        %466 = vmatprep.subr.mxu0 0.0
        %467 = vmatpush1.xpose.msra.mxu0 0.0
        %468 = vmatprep.subr.mxu0 0.0
        %469 = vmatpush1.xpose.msra.mxu0 0.0
        %470 = vmatprep.subr.mxu0 0.0
        %471 = vmatpush1.xpose.msra.mxu0 0.0
        %472 = vmatprep.subr.mxu0 0.0
        %473 = vmatpush1.xpose.msra.mxu0 0.0
        %474 = vmatprep.subr.mxu0 0.0
        %475 = vmatpush1.xpose.msra.mxu0 0.0
        %476 = vmatprep.subr.mxu0 0.0
        %477 = vmatpush1.xpose.msra.mxu0 0.0
        %478 = vmatprep.subr.mxu0 0.0
        %479 = vmatpush1.xpose.msra.mxu0 0.0
        %480 = vmatprep.mubr.f32.mxu0 0.0
        %481 = vmatmul.mubr.f32.gmra.mrb[0].mxu0 %v400
        %v482 = vpop.f32.mrb[0].mxu0
        %v483 = vadd.f32 0.0, %v482
        %v484 = vpop.f32.mrb[0].mxu0
        %485 = vmatprep.mubr.f32.mxu0 0.0
        %486 = vmatmul.mubr.f32.gmra.mrb[0].mxu0 %v402
        %v487 = vpop.f32.mrb[0].mxu0
        %v488 = vadd.f32 0.0, %v487
        %v489 = vpop.f32.mrb[0].mxu0
        %490 = vmatprep.mubr.f32.mxu0 0.0
        %491 = vmatmul.mubr.f32.gmra.mrb[0].mxu0 %v404
        %v492 = vpop.f32.mrb[0].mxu0
        %v493 = vadd.f32 0.0, %v492
        %v494 = vpop.f32.mrb[0].mxu0
        %495 = vmatprep.mubr.f32.mxu0 0.0
        %496 = vmatmul.mubr.f32.gmra.mrb[0].mxu0 %v406
        %v497 = vpop.f32.mrb[0].mxu0
        %v498 = vadd.f32 0.0, %v497
        %v499 = vpop.f32.mrb[0].mxu0
        %500 = vdwg.mxu0
        %v501 = vmul.f32 %v483, 0.125
        %v502 = vmul.f32 %v488, 0.125
        %v503 = vmul.f32 %v493, 0.125
        %v504 = vmul.f32 %v498, 0.125
        %v505 = vsel %vm383, %v501, -1e+30
        %v506 = vsel %vm384, %v502, -1e+30
        %v507 = vsel %vm385, %v503, -1e+30
        %v508 = vsel %vm386, %v504, -1e+30
        %vm509 = vcmask 261120
        %v510 = vsel %vm509, %v505, -inf
        %511 = vmax.xlane.f32.xlu0 %v510
        %v512 = vpop.xlane.xlu0 %511
        %v513 = vsel %vm509, %v506, -inf
        %514 = vmax.xlane.f32.xlu0 %v513
        %v515 = vpop.xlane.xlu0 %514
        %v516 = vsel %vm509, %v507, -inf
        %517 = vmax.xlane.f32.xlu0 %v516
        %v518 = vpop.xlane.xlu0 %517
        %v519 = vsel %vm509, %v508, -inf
        %520 = vmax.xlane.f32.xlu0 %v519
        %v521 = vpop.xlane.xlu0 %520
        %v522 = vsub.f32 %v505, %v512
        %v523 = vsub.f32 %v506, %v515
        %v524 = vsub.f32 %v507, %v518
        %v525 = vsub.f32 %v508, %v521
        %v526 = vmul.f32 %v522, 1.442695
        %v527 = vpow.pop %v526
        %v528 = vmul.f32 %v523, 1.442695
        %v529 = vpow.pop %v528
        %v530 = vmul.f32 %v524, 1.442695
        %v531 = vpow.pop %v530
        %v532 = vmul.f32 %v525, 1.442695
        %v533 = vpow.pop %v532
        %v534 = vsel %vm509, %v527, 0.0
        %535 = vadd.xlane.f32.xlu0 %v534
        %v536 = vpop.xlane.xlu0 %535
        %v537 = vsel %vm509, %v529, 0.0
        %538 = vadd.xlane.f32.xlu0 %v537
        %v539 = vpop.xlane.xlu0 %538
        %v540 = vsel %vm509, %v531, 0.0
        %541 = vadd.xlane.f32.xlu0 %v540
        %v542 = vpop.xlane.xlu0 %541
        %v543 = vsel %vm509, %v533, 0.0
        %544 = vadd.xlane.f32.xlu0 %v543
        %v545 = vpop.xlane.xlu0 %544
        %v547 = vsel %vm509, %v527, 0
        %v550 = vsel %vm509, %v529, 0
        %v553 = vsel %vm509, %v531, 0
        %v556 = vsel %vm509, %v533, 0
        %558 = vmatprep.subr.mxu0 0.0
        %559 = vmatpush1.msra.mxu0 %v356
        %560 = vmatprep.subr.mxu0 0.0
        %561 = vmatpush1.msra.mxu0 %v362
        %562 = vmatprep.subr.mxu0 0.0
        %563 = vmatpush1.msra.mxu0 %v368
        %564 = vmatprep.subr.mxu0 0.0
        %565 = vmatpush1.msra.mxu0 %v374
        %566 = vmatprep.subr.mxu0 0.0
        %567 = vmatpush1.msra.mxu0 0.0
        %568 = vmatprep.subr.mxu0 0.0
        %569 = vmatpush1.msra.mxu0 0.0
        %570 = vmatprep.subr.mxu0 0.0
        %571 = vmatpush1.msra.mxu0 0.0
        %572 = vmatprep.subr.mxu0 0.0
        %573 = vmatpush1.msra.mxu0 0.0
        %574 = vmatprep.subr.mxu0 0.0
        %575 = vmatpush1.msra.mxu0 0.0
        %576 = vmatprep.subr.mxu0 0.0
        %577 = vmatpush1.msra.mxu0 0.0
        %578 = vmatprep.subr.mxu0 0.0
        %579 = vmatpush1.msra.mxu0 0.0
        %580 = vmatprep.subr.mxu0 0.0
        %581 = vmatpush1.msra.mxu0 0.0
        %582 = vmatprep.subr.mxu0 0.0
        %583 = vmatpush1.msra.mxu0 0.0
        %584 = vmatprep.subr.mxu0 0.0
        %585 = vmatpush1.msra.mxu0 0.0
        %586 = vmatprep.subr.mxu0 0.0
        %587 = vmatpush1.msra.mxu0 0.0
        %588 = vmatprep.subr.mxu0 0.0
        %589 = vmatpush1.msra.mxu0 0.0
        %590 = vmatprep.subr.mxu0 0.0
        %591 = vmatpush1.msra.mxu0 0.0
        %592 = vmatprep.subr.mxu0 0.0
        %593 = vmatpush1.msra.mxu0 0.0
        %594 = vmatprep.subr.mxu0 0.0
        %595 = vmatpush1.msra.mxu0 0.0
        %596 = vmatprep.subr.mxu0 0.0
        %597 = vmatpush1.msra.mxu0 0.0
        %598 = vmatprep.subr.mxu0 0.0
        %599 = vmatpush1.msra.mxu0 0.0
        %600 = vmatprep.subr.mxu0 0.0
        %601 = vmatpush1.msra.mxu0 0.0
        %602 = vmatprep.subr.mxu0 0.0
        %603 = vmatpush1.msra.mxu0 0.0
        %604 = vmatprep.subr.mxu0 0.0
        %605 = vmatpush1.msra.mxu0 0.0
        %606 = vmatprep.subr.mxu0 0.0
        %607 = vmatpush1.msra.mxu0 0.0
        %608 = vmatprep.subr.mxu0 0.0
        %609 = vmatpush1.msra.mxu0 0.0
        %610 = vmatprep.subr.mxu0 0.0
        %611 = vmatpush1.msra.mxu0 0.0
        %612 = vmatprep.subr.mxu0 0.0
        %613 = vmatpush1.msra.mxu0 0.0
        %614 = vmatprep.subr.mxu0 0.0
        %615 = vmatpush1.msra.mxu0 0.0
        %616 = vmatprep.subr.mxu0 0.0
        %617 = vmatpush1.msra.mxu0 0.0
        %618 = vmatprep.subr.mxu0 0.0
        %619 = vmatpush1.msra.mxu0 0.0
        %620 = vmatprep.subr.mxu0 0.0
        %621 = vmatpush1.msra.mxu0 0.0
        %622 = vmatprep.mubr.f32.mxu0 0.0
        %623 = vmatmul.mubr.f32.gmra.mrb[0].mxu0 %v547
        %v624 = vpop.f32.mrb[0].mxu0
        %v625 = vadd.f32 0.0, %v624
        %v626 = vpop.f32.mrb[0].mxu0
        %627 = vmatprep.mubr.f32.mxu0 0.0
        %628 = vmatmul.mubr.f32.gmra.mrb[0].mxu0 %v550
        %v629 = vpop.f32.mrb[0].mxu0
        %v630 = vadd.f32 0.0, %v629
        %v631 = vpop.f32.mrb[0].mxu0
        %632 = vmatprep.mubr.f32.mxu0 0.0
        %633 = vmatmul.mubr.f32.gmra.mrb[0].mxu0 %v553
        %v634 = vpop.f32.mrb[0].mxu0
        %v635 = vadd.f32 0.0, %v634
        %v636 = vpop.f32.mrb[0].mxu0
        %637 = vmatprep.mubr.f32.mxu0 0.0
        %638 = vmatmul.mubr.f32.gmra.mrb[0].mxu0 %v556
        %v639 = vpop.f32.mrb[0].mxu0
        %v640 = vadd.f32 0.0, %v639
        %v641 = vpop.f32.mrb[0].mxu0
        %642 = vdwg.mxu0
        %v643 = vrcp.pop %v536
        %v644 = vrcp.pop %v539
        %v645 = vrcp.pop %v542
        %v646 = vrcp.pop %v545
        %v647 = vmul.f32 %v625, %v643
        %v648 = vmul.f32 %v630, %v644
        %v649 = vmul.f32 %v635, %v645
        %v650 = vmul.f32 %v640, %v646
        %651 = vrot.lane.b32.xlu0 %v354, 112
        %v652 = vpop.permute.xlu0 %651
        %653 = vrot.lane.b32.xlu0 %v360, 112
        %v654 = vpop.permute.xlu0 %653
        %655 = vrot.lane.b32.xlu0 %v366, 112
        %v656 = vpop.permute.xlu0 %655
        %657 = vrot.lane.b32.xlu0 %v372, 112
        %v658 = vpop.permute.xlu0 %657
        %659 = vrot.lane.b32.xlu0 %v354, 48
        %v660 = vpop.permute.xlu0 %659
        %661 = vrot.lane.b32.xlu0 %v360, 48
        %v662 = vpop.permute.xlu0 %661
        %663 = vrot.lane.b32.xlu0 %v366, 48
        %v664 = vpop.permute.xlu0 %663
        %665 = vrot.lane.b32.xlu0 %v372, 48
        %v666 = vpop.permute.xlu0 %665
        %v667 = vsel %vm399, %v652, 0
        %v669 = vsel %vm399, %v654, 0
        %v671 = vsel %vm399, %v656, 0
        %v673 = vsel %vm399, %v658, 0
        %v675 = vsel %vm399, %v660, 0
        %v677 = vsel %vm399, %v662, 0
        %v679 = vsel %vm399, %v664, 0
        %v681 = vsel %vm399, %v666, 0
        %683 = vmatprep.subr.mxu0 0.0
        %684 = vmatpush1.xpose.msra.mxu0 %v675
        %685 = vmatprep.subr.mxu0 0.0
        %686 = vmatpush1.xpose.msra.mxu0 %v677
        %687 = vmatprep.subr.mxu0 0.0
        %688 = vmatpush1.xpose.msra.mxu0 %v679
        %689 = vmatprep.subr.mxu0 0.0
        %690 = vmatpush1.xpose.msra.mxu0 %v681
        %691 = vmatprep.subr.mxu0 0.0
        %692 = vmatpush1.xpose.msra.mxu0 0.0
        %693 = vmatprep.subr.mxu0 0.0
        %694 = vmatpush1.xpose.msra.mxu0 0.0
        %695 = vmatprep.subr.mxu0 0.0
        %696 = vmatpush1.xpose.msra.mxu0 0.0
        %697 = vmatprep.subr.mxu0 0.0
        %698 = vmatpush1.xpose.msra.mxu0 0.0
        %699 = vmatprep.subr.mxu0 0.0
        %700 = vmatpush1.xpose.msra.mxu0 0.0
        %701 = vmatprep.subr.mxu0 0.0
        %702 = vmatpush1.xpose.msra.mxu0 0.0
        %703 = vmatprep.subr.mxu0 0.0
        %704 = vmatpush1.xpose.msra.mxu0 0.0
        %705 = vmatprep.subr.mxu0 0.0
        %706 = vmatpush1.xpose.msra.mxu0 0.0
        %707 = vmatprep.subr.mxu0 0.0
        %708 = vmatpush1.xpose.msra.mxu0 0.0
        %709 = vmatprep.subr.mxu0 0.0
        %710 = vmatpush1.xpose.msra.mxu0 0.0
        %711 = vmatprep.subr.mxu0 0.0
        %712 = vmatpush1.xpose.msra.mxu0 0.0
        %713 = vmatprep.subr.mxu0 0.0
        %714 = vmatpush1.xpose.msra.mxu0 0.0
        %715 = vmatprep.subr.mxu0 0.0
        %716 = vmatpush1.xpose.msra.mxu0 0.0
        %717 = vmatprep.subr.mxu0 0.0
        %718 = vmatpush1.xpose.msra.mxu0 0.0
        %719 = vmatprep.subr.mxu0 0.0
        %720 = vmatpush1.xpose.msra.mxu0 0.0
        %721 = vmatprep.subr.mxu0 0.0
        %722 = vmatpush1.xpose.msra.mxu0 0.0
        %723 = vmatprep.subr.mxu0 0.0
        %724 = vmatpush1.xpose.msra.mxu0 0.0
        %725 = vmatprep.subr.mxu0 0.0
        %726 = vmatpush1.xpose.msra.mxu0 0.0
        %727 = vmatprep.subr.mxu0 0.0
        %728 = vmatpush1.xpose.msra.mxu0 0.0
        %729 = vmatprep.subr.mxu0 0.0
        %730 = vmatpush1.xpose.msra.mxu0 0.0
        %731 = vmatprep.subr.mxu0 0.0
        %732 = vmatpush1.xpose.msra.mxu0 0.0
        %733 = vmatprep.subr.mxu0 0.0
        %734 = vmatpush1.xpose.msra.mxu0 0.0
        %735 = vmatprep.subr.mxu0 0.0
        %736 = vmatpush1.xpose.msra.mxu0 0.0
        %737 = vmatprep.subr.mxu0 0.0
        %738 = vmatpush1.xpose.msra.mxu0 0.0
        %739 = vmatprep.subr.mxu0 0.0
        %740 = vmatpush1.xpose.msra.mxu0 0.0
        %741 = vmatprep.subr.mxu0 0.0
        %742 = vmatpush1.xpose.msra.mxu0 0.0
        %743 = vmatprep.subr.mxu0 0.0
        %744 = vmatpush1.xpose.msra.mxu0 0.0
        %745 = vmatprep.subr.mxu0 0.0
        %746 = vmatpush1.xpose.msra.mxu0 0.0
        %747 = vmatprep.mubr.f32.mxu0 0.0
        %748 = vmatmul.mubr.f32.gmra.mrb[0].mxu0 %v667
        %v749 = vpop.f32.mrb[0].mxu0
        %v750 = vadd.f32 0.0, %v749
        %v751 = vpop.f32.mrb[0].mxu0
        %752 = vmatprep.mubr.f32.mxu0 0.0
        %753 = vmatmul.mubr.f32.gmra.mrb[0].mxu0 %v669
        %v754 = vpop.f32.mrb[0].mxu0
        %v755 = vadd.f32 0.0, %v754
        %v756 = vpop.f32.mrb[0].mxu0
        %757 = vmatprep.mubr.f32.mxu0 0.0
        %758 = vmatmul.mubr.f32.gmra.mrb[0].mxu0 %v671
        %v759 = vpop.f32.mrb[0].mxu0
        %v760 = vadd.f32 0.0, %v759
        %v761 = vpop.f32.mrb[0].mxu0
        %762 = vmatprep.mubr.f32.mxu0 0.0
        %763 = vmatmul.mubr.f32.gmra.mrb[0].mxu0 %v673
        %v764 = vpop.f32.mrb[0].mxu0
        %v765 = vadd.f32 0.0, %v764
        %v766 = vpop.f32.mrb[0].mxu0
        %767 = vdwg.mxu0
        %v768 = vmul.f32 %v750, 0.125
        %v769 = vmul.f32 %v755, 0.125
        %v770 = vmul.f32 %v760, 0.125
        %v771 = vmul.f32 %v765, 0.125
        %v772 = vsel %vm383, %v768, -1e+30
        %v773 = vsel %vm384, %v769, -1e+30
        %v774 = vsel %vm385, %v770, -1e+30
        %v775 = vsel %vm386, %v771, -1e+30
        %v776 = vsel %vm509, %v772, -inf
        %777 = vmax.xlane.f32.xlu0 %v776
        %v778 = vpop.xlane.xlu0 %777
        %v779 = vsel %vm509, %v773, -inf
        %780 = vmax.xlane.f32.xlu0 %v779
        %v781 = vpop.xlane.xlu0 %780
        %v782 = vsel %vm509, %v774, -inf
        %783 = vmax.xlane.f32.xlu0 %v782
        %v784 = vpop.xlane.xlu0 %783
        %v785 = vsel %vm509, %v775, -inf
        %786 = vmax.xlane.f32.xlu0 %v785
        %v787 = vpop.xlane.xlu0 %786
        %v788 = vsub.f32 %v772, %v778
        %v789 = vsub.f32 %v773, %v781
        %v790 = vsub.f32 %v774, %v784
        %v791 = vsub.f32 %v775, %v787
        %v792 = vmul.f32 %v788, 1.442695
        %v793 = vpow.pop %v792
        %v794 = vmul.f32 %v789, 1.442695
        %v795 = vpow.pop %v794
        %v796 = vmul.f32 %v790, 1.442695
        %v797 = vpow.pop %v796
        %v798 = vmul.f32 %v791, 1.442695
        %v799 = vpow.pop %v798
        %v800 = vsel %vm509, %v793, 0.0
        %801 = vadd.xlane.f32.xlu0 %v800
        %v802 = vpop.xlane.xlu0 %801
        %v803 = vsel %vm509, %v795, 0.0
        %804 = vadd.xlane.f32.xlu0 %v803
        %v805 = vpop.xlane.xlu0 %804
        %v806 = vsel %vm509, %v797, 0.0
        %807 = vadd.xlane.f32.xlu0 %v806
        %v808 = vpop.xlane.xlu0 %807
        %v809 = vsel %vm509, %v799, 0.0
        %810 = vadd.xlane.f32.xlu0 %v809
        %v811 = vpop.xlane.xlu0 %810
        %816 = vrot.lane.b32.xlu0 %v356, 112
        %v817 = vpop.permute.xlu0 %816
        %818 = vrot.lane.b32.xlu0 %v362, 112
        %v819 = vpop.permute.xlu0 %818
        %820 = vrot.lane.b32.xlu0 %v368, 112
        %v821 = vpop.permute.xlu0 %820
        %822 = vrot.lane.b32.xlu0 %v374, 112
        %v823 = vpop.permute.xlu0 %822
        %v829 = vsel %vm509, %v793, 0
        %v832 = vsel %vm509, %v795, 0
        %v835 = vsel %vm509, %v797, 0
        %v838 = vsel %vm509, %v799, 0
        %840 = vmatprep.subr.mxu0 0.0
        %841 = vmatpush1.msra.mxu0 %v817
        %842 = vmatprep.subr.mxu0 0.0
        %843 = vmatpush1.msra.mxu0 %v819
        %844 = vmatprep.subr.mxu0 0.0
        %845 = vmatpush1.msra.mxu0 %v821
        %846 = vmatprep.subr.mxu0 0.0
        %847 = vmatpush1.msra.mxu0 %v823
        %848 = vmatprep.subr.mxu0 0.0
        %849 = vmatpush1.msra.mxu0 0.0
        %850 = vmatprep.subr.mxu0 0.0
        %851 = vmatpush1.msra.mxu0 0.0
        %852 = vmatprep.subr.mxu0 0.0
        %853 = vmatpush1.msra.mxu0 0.0
        %854 = vmatprep.subr.mxu0 0.0
        %855 = vmatpush1.msra.mxu0 0.0
        %856 = vmatprep.subr.mxu0 0.0
        %857 = vmatpush1.msra.mxu0 0.0
        %858 = vmatprep.subr.mxu0 0.0
        %859 = vmatpush1.msra.mxu0 0.0
        %860 = vmatprep.subr.mxu0 0.0
        %861 = vmatpush1.msra.mxu0 0.0
        %862 = vmatprep.subr.mxu0 0.0
        %863 = vmatpush1.msra.mxu0 0.0
        %864 = vmatprep.subr.mxu0 0.0
        %865 = vmatpush1.msra.mxu0 0.0
        %866 = vmatprep.subr.mxu0 0.0
        %867 = vmatpush1.msra.mxu0 0.0
        %868 = vmatprep.subr.mxu0 0.0
        %869 = vmatpush1.msra.mxu0 0.0
        %870 = vmatprep.subr.mxu0 0.0
        %871 = vmatpush1.msra.mxu0 0.0
        %872 = vmatprep.subr.mxu0 0.0
        %873 = vmatpush1.msra.mxu0 0.0
        %874 = vmatprep.subr.mxu0 0.0
        %875 = vmatpush1.msra.mxu0 0.0
        %876 = vmatprep.subr.mxu0 0.0
        %877 = vmatpush1.msra.mxu0 0.0
        %878 = vmatprep.subr.mxu0 0.0
        %879 = vmatpush1.msra.mxu0 0.0
        %880 = vmatprep.subr.mxu0 0.0
        %881 = vmatpush1.msra.mxu0 0.0
        %882 = vmatprep.subr.mxu0 0.0
        %883 = vmatpush1.msra.mxu0 0.0
        %884 = vmatprep.subr.mxu0 0.0
        %885 = vmatpush1.msra.mxu0 0.0
        %886 = vmatprep.subr.mxu0 0.0
        %887 = vmatpush1.msra.mxu0 0.0
        %888 = vmatprep.subr.mxu0 0.0
        %889 = vmatpush1.msra.mxu0 0.0
        %890 = vmatprep.subr.mxu0 0.0
        %891 = vmatpush1.msra.mxu0 0.0
        %892 = vmatprep.subr.mxu0 0.0
        %893 = vmatpush1.msra.mxu0 0.0
        %894 = vmatprep.subr.mxu0 0.0
        %895 = vmatpush1.msra.mxu0 0.0
        %896 = vmatprep.subr.mxu0 0.0
        %897 = vmatpush1.msra.mxu0 0.0
        %898 = vmatprep.subr.mxu0 0.0
        %899 = vmatpush1.msra.mxu0 0.0
        %900 = vmatprep.subr.mxu0 0.0
        %901 = vmatpush1.msra.mxu0 0.0
        %902 = vmatprep.subr.mxu0 0.0
        %903 = vmatpush1.msra.mxu0 0.0
        %904 = vmatprep.mubr.f32.mxu0 0.0
        %905 = vmatmul.mubr.f32.gmra.mrb[0].mxu0 %v829
        %v906 = vpop.f32.mrb[0].mxu0
        %v907 = vadd.f32 0.0, %v906
        %v908 = vpop.f32.mrb[0].mxu0
        %909 = vmatprep.mubr.f32.mxu0 0.0
        %910 = vmatmul.mubr.f32.gmra.mrb[0].mxu0 %v832
        %v911 = vpop.f32.mrb[0].mxu0
        %v912 = vadd.f32 0.0, %v911
        %v913 = vpop.f32.mrb[0].mxu0
        %914 = vmatprep.mubr.f32.mxu0 0.0
        %915 = vmatmul.mubr.f32.gmra.mrb[0].mxu0 %v835
        %v916 = vpop.f32.mrb[0].mxu0
        %v917 = vadd.f32 0.0, %v916
        %v918 = vpop.f32.mrb[0].mxu0
        %919 = vmatprep.mubr.f32.mxu0 0.0
        %920 = vmatmul.mubr.f32.gmra.mrb[0].mxu0 %v838
        %v921 = vpop.f32.mrb[0].mxu0
        %v922 = vadd.f32 0.0, %v921
        %v923 = vpop.f32.mrb[0].mxu0
        %924 = vdwg.mxu0
        %v925 = vrcp.pop %v802
        %v926 = vrcp.pop %v805
        %v927 = vrcp.pop %v808
        %v928 = vrcp.pop %v811
        %v929 = vmul.f32 %v907, %v925
        %v930 = vmul.f32 %v912, %v926
        %v931 = vmul.f32 %v917, %v927
        %v932 = vmul.f32 %v922, %v928
        %v934 = vsel %vm399, %v929, 0
        %v937 = vsel %vm399, %v930, 0
        %v940 = vsel %vm399, %v931, 0
        %v943 = vsel %vm399, %v932, 0
        %945 = vmatprep.subr.mxu0 0.0
        %946 = vmatpush1.msra.mxu0 %v267
        %947 = vmatprep.subr.mxu0 0.0
        %948 = vmatpush1.msra.mxu0 %v268
        %949 = vmatprep.subr.mxu0 0.0
        %950 = vmatpush1.msra.mxu0 0.0
        %951 = vmatprep.subr.mxu0 0.0
        %952 = vmatpush1.msra.mxu0 0.0
        %953 = vmatprep.subr.mxu0 0.0
        %954 = vmatpush1.msra.mxu0 0.0
        %955 = vmatprep.subr.mxu0 0.0
        %956 = vmatpush1.msra.mxu0 0.0
        %957 = vmatprep.subr.mxu0 0.0
        %958 = vmatpush1.msra.mxu0 0.0
        %959 = vmatprep.subr.mxu0 0.0
        %960 = vmatpush1.msra.mxu0 0.0
        %961 = vmatprep.subr.mxu0 0.0
        %962 = vmatpush1.msra.mxu0 0.0
        %963 = vmatprep.subr.mxu0 0.0
        %964 = vmatpush1.msra.mxu0 0.0
        %965 = vmatprep.subr.mxu0 0.0
        %966 = vmatpush1.msra.mxu0 0.0
        %967 = vmatprep.subr.mxu0 0.0
        %968 = vmatpush1.msra.mxu0 0.0
        %969 = vmatprep.subr.mxu0 0.0
        %970 = vmatpush1.msra.mxu0 0.0
        %971 = vmatprep.subr.mxu0 0.0
        %972 = vmatpush1.msra.mxu0 0.0
        %973 = vmatprep.subr.mxu0 0.0
        %974 = vmatpush1.msra.mxu0 0.0
        %975 = vmatprep.subr.mxu0 0.0
        %976 = vmatpush1.msra.mxu0 0.0
        %977 = vmatprep.subr.mxu0 0.0
        %978 = vmatpush1.msra.mxu0 0.0
        %979 = vmatprep.subr.mxu0 0.0
        %980 = vmatpush1.msra.mxu0 0.0
        %981 = vmatprep.subr.mxu0 0.0
        %982 = vmatpush1.msra.mxu0 0.0
        %983 = vmatprep.subr.mxu0 0.0
        %984 = vmatpush1.msra.mxu0 0.0
        %985 = vmatprep.subr.mxu0 0.0
        %986 = vmatpush1.msra.mxu0 0.0
        %987 = vmatprep.subr.mxu0 0.0
        %988 = vmatpush1.msra.mxu0 0.0
        %989 = vmatprep.subr.mxu0 0.0
        %990 = vmatpush1.msra.mxu0 0.0
        %991 = vmatprep.subr.mxu0 0.0
        %992 = vmatpush1.msra.mxu0 0.0
        %993 = vmatprep.subr.mxu0 0.0
        %994 = vmatpush1.msra.mxu0 0.0
        %995 = vmatprep.subr.mxu0 0.0
        %996 = vmatpush1.msra.mxu0 0.0
        %997 = vmatprep.subr.mxu0 0.0
        %998 = vmatpush1.msra.mxu0 0.0
        %999 = vmatprep.subr.mxu0 0.0
        %1000 = vmatpush1.msra.mxu0 0.0
        %1001 = vmatprep.subr.mxu0 0.0
        %1002 = vmatpush1.msra.mxu0 0.0
        %1003 = vmatprep.subr.mxu0 0.0
        %1004 = vmatpush1.msra.mxu0 0.0
        %1005 = vmatprep.subr.mxu0 0.0
        %1006 = vmatpush1.msra.mxu0 0.0
        %1007 = vmatprep.subr.mxu0 0.0
        %1008 = vmatpush1.msra.mxu0 0.0
        %1009 = vmatprep.mubr.f32.mxu0 0.0
        %1010 = vmatmul.mubr.f32.gmra.mrb[0].mxu0 %v934
        %v1011 = vpop.f32.mrb[0].mxu0
        %v1012 = vadd.f32 0.0, %v1011
        %v1013 = vpop.f32.mrb[0].mxu0
        %1014 = vmatprep.mubr.f32.mxu0 0.0
        %1015 = vmatmul.mubr.f32.gmra.mrb[0].mxu0 %v937
        %v1016 = vpop.f32.mrb[0].mxu0
        %v1017 = vadd.f32 0.0, %v1016
        %v1018 = vpop.f32.mrb[0].mxu0
        %1019 = vmatprep.mubr.f32.mxu0 0.0
        %1020 = vmatmul.mubr.f32.gmra.mrb[0].mxu0 %v940
        %v1021 = vpop.f32.mrb[0].mxu0
        %v1022 = vadd.f32 0.0, %v1021
        %v1023 = vpop.f32.mrb[0].mxu0
        %1024 = vmatprep.mubr.f32.mxu0 0.0
        %1025 = vmatmul.mubr.f32.gmra.mrb[0].mxu0 %v943
        %v1026 = vpop.f32.mrb[0].mxu0
        %v1027 = vadd.f32 0.0, %v1026
        %v1028 = vpop.f32.mrb[0].mxu0
        %1029 = vdwg.mxu0
        %v1031 = vsel %vm399, %v647, 0
        %v1034 = vsel %vm399, %v648, 0
        %v1037 = vsel %vm399, %v649, 0
        %v1040 = vsel %vm399, %v650, 0
        %1042 = vmatprep.subr.mxu0 0.0
        %1043 = vmatpush1.msra.mxu0 %v265
        %1044 = vmatprep.subr.mxu0 0.0
        %1045 = vmatpush1.msra.mxu0 %v266
        %1046 = vmatprep.subr.mxu0 0.0
        %1047 = vmatpush1.msra.mxu0 0.0
        %1048 = vmatprep.subr.mxu0 0.0
        %1049 = vmatpush1.msra.mxu0 0.0
        %1050 = vmatprep.subr.mxu0 0.0
        %1051 = vmatpush1.msra.mxu0 0.0
        %1052 = vmatprep.subr.mxu0 0.0
        %1053 = vmatpush1.msra.mxu0 0.0
        %1054 = vmatprep.subr.mxu0 0.0
        %1055 = vmatpush1.msra.mxu0 0.0
        %1056 = vmatprep.subr.mxu0 0.0
        %1057 = vmatpush1.msra.mxu0 0.0
        %1058 = vmatprep.subr.mxu0 0.0
        %1059 = vmatpush1.msra.mxu0 0.0
        %1060 = vmatprep.subr.mxu0 0.0
        %1061 = vmatpush1.msra.mxu0 0.0
        %1062 = vmatprep.subr.mxu0 0.0
        %1063 = vmatpush1.msra.mxu0 0.0
        %1064 = vmatprep.subr.mxu0 0.0
        %1065 = vmatpush1.msra.mxu0 0.0
        %1066 = vmatprep.subr.mxu0 0.0
        %1067 = vmatpush1.msra.mxu0 0.0
        %1068 = vmatprep.subr.mxu0 0.0
        %1069 = vmatpush1.msra.mxu0 0.0
        %1070 = vmatprep.subr.mxu0 0.0
        %1071 = vmatpush1.msra.mxu0 0.0
        %1072 = vmatprep.subr.mxu0 0.0
        %1073 = vmatpush1.msra.mxu0 0.0
        %1074 = vmatprep.subr.mxu0 0.0
        %1075 = vmatpush1.msra.mxu0 0.0
        %1076 = vmatprep.subr.mxu0 0.0
        %1077 = vmatpush1.msra.mxu0 0.0
        %1078 = vmatprep.subr.mxu0 0.0
        %1079 = vmatpush1.msra.mxu0 0.0
        %1080 = vmatprep.subr.mxu0 0.0
        %1081 = vmatpush1.msra.mxu0 0.0
        %1082 = vmatprep.subr.mxu0 0.0
        %1083 = vmatpush1.msra.mxu0 0.0
        %1084 = vmatprep.subr.mxu0 0.0
        %1085 = vmatpush1.msra.mxu0 0.0
        %1086 = vmatprep.subr.mxu0 0.0
        %1087 = vmatpush1.msra.mxu0 0.0
        %1088 = vmatprep.subr.mxu0 0.0
        %1089 = vmatpush1.msra.mxu0 0.0
        %1090 = vmatprep.subr.mxu0 0.0
        %1091 = vmatpush1.msra.mxu0 0.0
        %1092 = vmatprep.subr.mxu0 0.0
        %1093 = vmatpush1.msra.mxu0 0.0
        %1094 = vmatprep.subr.mxu0 0.0
        %1095 = vmatpush1.msra.mxu0 0.0
        %1096 = vmatprep.subr.mxu0 0.0
        %1097 = vmatpush1.msra.mxu0 0.0
        %1098 = vmatprep.subr.mxu0 0.0
        %1099 = vmatpush1.msra.mxu0 0.0
        %1100 = vmatprep.subr.mxu0 0.0
        %1101 = vmatpush1.msra.mxu0 0.0
        %1102 = vmatprep.subr.mxu0 0.0
        %1103 = vmatpush1.msra.mxu0 0.0
        %1104 = vmatprep.subr.mxu0 0.0
        %1105 = vmatpush1.msra.mxu0 0.0
        %1106 = vmatprep.mubr.f32.mxu0 0.0
        %1107 = vmatmul.mubr.f32.gmra.mrb[0].mxu0 %v1031
        %v1108 = vpop.f32.mrb[0].mxu0
        %v1109 = vadd.f32 %v1012, %v1108
        %v1110 = vpop.f32.mrb[0].mxu0
        %1111 = vmatprep.mubr.f32.mxu0 0.0
        %1112 = vmatmul.mubr.f32.gmra.mrb[0].mxu0 %v1034
        %v1113 = vpop.f32.mrb[0].mxu0
        %v1114 = vadd.f32 %v1017, %v1113
        %v1115 = vpop.f32.mrb[0].mxu0
        %1116 = vmatprep.mubr.f32.mxu0 0.0
        %1117 = vmatmul.mubr.f32.gmra.mrb[0].mxu0 %v1037
        %v1118 = vpop.f32.mrb[0].mxu0
        %v1119 = vadd.f32 %v1022, %v1118
        %v1120 = vpop.f32.mrb[0].mxu0
        %1121 = vmatprep.mubr.f32.mxu0 0.0
        %1122 = vmatmul.mubr.f32.gmra.mrb[0].mxu0 %v1040
        %v1123 = vpop.f32.mrb[0].mxu0
        %v1124 = vadd.f32 %v1027, %v1123
        %v1125 = vpop.f32.mrb[0].mxu0
        %1126 = vdwg.mxu0
        %1127 = vrot.lane.b32.xlu0 %v354, 96
        %v1128 = vpop.permute.xlu0 %1127
        %1129 = vrot.lane.b32.xlu0 %v360, 96
        %v1130 = vpop.permute.xlu0 %1129
        %1131 = vrot.lane.b32.xlu0 %v366, 96
        %v1132 = vpop.permute.xlu0 %1131
        %1133 = vrot.lane.b32.xlu0 %v372, 96
        %v1134 = vpop.permute.xlu0 %1133
        %1135 = vrot.lane.b32.xlu0 %v354, 32
        %v1136 = vpop.permute.xlu0 %1135
        %1137 = vrot.lane.b32.xlu0 %v360, 32
        %v1138 = vpop.permute.xlu0 %1137
        %1139 = vrot.lane.b32.xlu0 %v366, 32
        %v1140 = vpop.permute.xlu0 %1139
        %1141 = vrot.lane.b32.xlu0 %v372, 32
        %v1142 = vpop.permute.xlu0 %1141
        %v1143 = vsel %vm399, %v1128, 0
        %v1145 = vsel %vm399, %v1130, 0
        %v1147 = vsel %vm399, %v1132, 0
        %v1149 = vsel %vm399, %v1134, 0
        %v1151 = vsel %vm399, %v1136, 0
        %v1153 = vsel %vm399, %v1138, 0
        %v1155 = vsel %vm399, %v1140, 0
        %v1157 = vsel %vm399, %v1142, 0
        %1159 = vmatprep.subr.mxu0 0.0
        %1160 = vmatpush1.xpose.msra.mxu0 %v1151
        %1161 = vmatprep.subr.mxu0 0.0
        %1162 = vmatpush1.xpose.msra.mxu0 %v1153
        %1163 = vmatprep.subr.mxu0 0.0
        %1164 = vmatpush1.xpose.msra.mxu0 %v1155
        %1165 = vmatprep.subr.mxu0 0.0
        %1166 = vmatpush1.xpose.msra.mxu0 %v1157
        %1167 = vmatprep.subr.mxu0 0.0
        %1168 = vmatpush1.xpose.msra.mxu0 0.0
        %1169 = vmatprep.subr.mxu0 0.0
        %1170 = vmatpush1.xpose.msra.mxu0 0.0
        %1171 = vmatprep.subr.mxu0 0.0
        %1172 = vmatpush1.xpose.msra.mxu0 0.0
        %1173 = vmatprep.subr.mxu0 0.0
        %1174 = vmatpush1.xpose.msra.mxu0 0.0
        %1175 = vmatprep.subr.mxu0 0.0
        %1176 = vmatpush1.xpose.msra.mxu0 0.0
        %1177 = vmatprep.subr.mxu0 0.0
        %1178 = vmatpush1.xpose.msra.mxu0 0.0
        %1179 = vmatprep.subr.mxu0 0.0
        %1180 = vmatpush1.xpose.msra.mxu0 0.0
        %1181 = vmatprep.subr.mxu0 0.0
        %1182 = vmatpush1.xpose.msra.mxu0 0.0
        %1183 = vmatprep.subr.mxu0 0.0
        %1184 = vmatpush1.xpose.msra.mxu0 0.0
        %1185 = vmatprep.subr.mxu0 0.0
        %1186 = vmatpush1.xpose.msra.mxu0 0.0
        %1187 = vmatprep.subr.mxu0 0.0
        %1188 = vmatpush1.xpose.msra.mxu0 0.0
        %1189 = vmatprep.subr.mxu0 0.0
        %1190 = vmatpush1.xpose.msra.mxu0 0.0
        %1191 = vmatprep.subr.mxu0 0.0
        %1192 = vmatpush1.xpose.msra.mxu0 0.0
        %1193 = vmatprep.subr.mxu0 0.0
        %1194 = vmatpush1.xpose.msra.mxu0 0.0
        %1195 = vmatprep.subr.mxu0 0.0
        %1196 = vmatpush1.xpose.msra.mxu0 0.0
        %1197 = vmatprep.subr.mxu0 0.0
        %1198 = vmatpush1.xpose.msra.mxu0 0.0
        %1199 = vmatprep.subr.mxu0 0.0
        %1200 = vmatpush1.xpose.msra.mxu0 0.0
        %1201 = vmatprep.subr.mxu0 0.0
        %1202 = vmatpush1.xpose.msra.mxu0 0.0
        %1203 = vmatprep.subr.mxu0 0.0
        %1204 = vmatpush1.xpose.msra.mxu0 0.0
        %1205 = vmatprep.subr.mxu0 0.0
        %1206 = vmatpush1.xpose.msra.mxu0 0.0
        %1207 = vmatprep.subr.mxu0 0.0
        %1208 = vmatpush1.xpose.msra.mxu0 0.0
        %1209 = vmatprep.subr.mxu0 0.0
        %1210 = vmatpush1.xpose.msra.mxu0 0.0
        %1211 = vmatprep.subr.mxu0 0.0
        %1212 = vmatpush1.xpose.msra.mxu0 0.0
        %1213 = vmatprep.subr.mxu0 0.0
        %1214 = vmatpush1.xpose.msra.mxu0 0.0
        %1215 = vmatprep.subr.mxu0 0.0
        %1216 = vmatpush1.xpose.msra.mxu0 0.0
        %1217 = vmatprep.subr.mxu0 0.0
        %1218 = vmatpush1.xpose.msra.mxu0 0.0
        %1219 = vmatprep.subr.mxu0 0.0
        %1220 = vmatpush1.xpose.msra.mxu0 0.0
        %1221 = vmatprep.subr.mxu0 0.0
        %1222 = vmatpush1.xpose.msra.mxu0 0.0
        %1223 = vmatprep.mubr.f32.mxu0 0.0
        %1224 = vmatmul.mubr.f32.gmra.mrb[0].mxu0 %v1143
        %v1225 = vpop.f32.mrb[0].mxu0
        %v1226 = vadd.f32 0.0, %v1225
        %v1227 = vpop.f32.mrb[0].mxu0
        %1228 = vmatprep.mubr.f32.mxu0 0.0
        %1229 = vmatmul.mubr.f32.gmra.mrb[0].mxu0 %v1145
        %v1230 = vpop.f32.mrb[0].mxu0
        %v1231 = vadd.f32 0.0, %v1230
        %v1232 = vpop.f32.mrb[0].mxu0
        %1233 = vmatprep.mubr.f32.mxu0 0.0
        %1234 = vmatmul.mubr.f32.gmra.mrb[0].mxu0 %v1147
        %v1235 = vpop.f32.mrb[0].mxu0
        %v1236 = vadd.f32 0.0, %v1235
        %v1237 = vpop.f32.mrb[0].mxu0
        %1238 = vmatprep.mubr.f32.mxu0 0.0
        %1239 = vmatmul.mubr.f32.gmra.mrb[0].mxu0 %v1149
        %v1240 = vpop.f32.mrb[0].mxu0
        %v1241 = vadd.f32 0.0, %v1240
        %v1242 = vpop.f32.mrb[0].mxu0
        %1243 = vdwg.mxu0
        %v1244 = vmul.f32 %v1226, 0.125
        %v1245 = vmul.f32 %v1231, 0.125
        %v1246 = vmul.f32 %v1236, 0.125
        %v1247 = vmul.f32 %v1241, 0.125
        %v1248 = vsel %vm383, %v1244, -1e+30
        %v1249 = vsel %vm384, %v1245, -1e+30
        %v1250 = vsel %vm385, %v1246, -1e+30
        %v1251 = vsel %vm386, %v1247, -1e+30
        %v1252 = vsel %vm509, %v1248, -inf
        %1253 = vmax.xlane.f32.xlu0 %v1252
        %v1254 = vpop.xlane.xlu0 %1253
        %v1255 = vsel %vm509, %v1249, -inf
        %1256 = vmax.xlane.f32.xlu0 %v1255
        %v1257 = vpop.xlane.xlu0 %1256
        %v1258 = vsel %vm509, %v1250, -inf
        %1259 = vmax.xlane.f32.xlu0 %v1258
        %v1260 = vpop.xlane.xlu0 %1259
        %v1261 = vsel %vm509, %v1251, -inf
        %1262 = vmax.xlane.f32.xlu0 %v1261
        %v1263 = vpop.xlane.xlu0 %1262
        %v1264 = vsub.f32 %v1248, %v1254
        %v1265 = vsub.f32 %v1249, %v1257
        %v1266 = vsub.f32 %v1250, %v1260
        %v1267 = vsub.f32 %v1251, %v1263
        %v1268 = vmul.f32 %v1264, 1.442695
        %v1269 = vpow.pop %v1268
        %v1270 = vmul.f32 %v1265, 1.442695
        %v1271 = vpow.pop %v1270
        %v1272 = vmul.f32 %v1266, 1.442695
        %v1273 = vpow.pop %v1272
        %v1274 = vmul.f32 %v1267, 1.442695
        %v1275 = vpow.pop %v1274
        %v1276 = vsel %vm509, %v1269, 0.0
        %1277 = vadd.xlane.f32.xlu0 %v1276
        %v1278 = vpop.xlane.xlu0 %1277
        %v1279 = vsel %vm509, %v1271, 0.0
        %1280 = vadd.xlane.f32.xlu0 %v1279
        %v1281 = vpop.xlane.xlu0 %1280
        %v1282 = vsel %vm509, %v1273, 0.0
        %1283 = vadd.xlane.f32.xlu0 %v1282
        %v1284 = vpop.xlane.xlu0 %1283
        %v1285 = vsel %vm509, %v1275, 0.0
        %1286 = vadd.xlane.f32.xlu0 %v1285
        %v1287 = vpop.xlane.xlu0 %1286
        %1288 = vrot.lane.b32.xlu0 %v356, 96
        %v1289 = vpop.permute.xlu0 %1288
        %1290 = vrot.lane.b32.xlu0 %v362, 96
        %v1291 = vpop.permute.xlu0 %1290
        %1292 = vrot.lane.b32.xlu0 %v368, 96
        %v1293 = vpop.permute.xlu0 %1292
        %1294 = vrot.lane.b32.xlu0 %v374, 96
        %v1295 = vpop.permute.xlu0 %1294
        %v1301 = vsel %vm509, %v1269, 0
        %v1304 = vsel %vm509, %v1271, 0
        %v1307 = vsel %vm509, %v1273, 0
        %v1310 = vsel %vm509, %v1275, 0
        %1312 = vmatprep.subr.mxu0 0.0
        %1313 = vmatpush1.msra.mxu0 %v1289
        %1314 = vmatprep.subr.mxu0 0.0
        %1315 = vmatpush1.msra.mxu0 %v1291
        %1316 = vmatprep.subr.mxu0 0.0
        %1317 = vmatpush1.msra.mxu0 %v1293
        %1318 = vmatprep.subr.mxu0 0.0
        %1319 = vmatpush1.msra.mxu0 %v1295
        %1320 = vmatprep.subr.mxu0 0.0
        %1321 = vmatpush1.msra.mxu0 0.0
        %1322 = vmatprep.subr.mxu0 0.0
        %1323 = vmatpush1.msra.mxu0 0.0
        %1324 = vmatprep.subr.mxu0 0.0
        %1325 = vmatpush1.msra.mxu0 0.0
        %1326 = vmatprep.subr.mxu0 0.0
        %1327 = vmatpush1.msra.mxu0 0.0
        %1328 = vmatprep.subr.mxu0 0.0
        %1329 = vmatpush1.msra.mxu0 0.0
        %1330 = vmatprep.subr.mxu0 0.0
        %1331 = vmatpush1.msra.mxu0 0.0
        %1332 = vmatprep.subr.mxu0 0.0
        %1333 = vmatpush1.msra.mxu0 0.0
        %1334 = vmatprep.subr.mxu0 0.0
        %1335 = vmatpush1.msra.mxu0 0.0
        %1336 = vmatprep.subr.mxu0 0.0
        %1337 = vmatpush1.msra.mxu0 0.0
        %1338 = vmatprep.subr.mxu0 0.0
        %1339 = vmatpush1.msra.mxu0 0.0
        %1340 = vmatprep.subr.mxu0 0.0
        %1341 = vmatpush1.msra.mxu0 0.0
        %1342 = vmatprep.subr.mxu0 0.0
        %1343 = vmatpush1.msra.mxu0 0.0
        %1344 = vmatprep.subr.mxu0 0.0
        %1345 = vmatpush1.msra.mxu0 0.0
        %1346 = vmatprep.subr.mxu0 0.0
        %1347 = vmatpush1.msra.mxu0 0.0
        %1348 = vmatprep.subr.mxu0 0.0
        %1349 = vmatpush1.msra.mxu0 0.0
        %1350 = vmatprep.subr.mxu0 0.0
        %1351 = vmatpush1.msra.mxu0 0.0
        %1352 = vmatprep.subr.mxu0 0.0
        %1353 = vmatpush1.msra.mxu0 0.0
        %1354 = vmatprep.subr.mxu0 0.0
        %1355 = vmatpush1.msra.mxu0 0.0
        %1356 = vmatprep.subr.mxu0 0.0
        %1357 = vmatpush1.msra.mxu0 0.0
        %1358 = vmatprep.subr.mxu0 0.0
        %1359 = vmatpush1.msra.mxu0 0.0
        %1360 = vmatprep.subr.mxu0 0.0
        %1361 = vmatpush1.msra.mxu0 0.0
        %1362 = vmatprep.subr.mxu0 0.0
        %1363 = vmatpush1.msra.mxu0 0.0
        %1364 = vmatprep.subr.mxu0 0.0
        %1365 = vmatpush1.msra.mxu0 0.0
        %1366 = vmatprep.subr.mxu0 0.0
        %1367 = vmatpush1.msra.mxu0 0.0
        %1368 = vmatprep.subr.mxu0 0.0
        %1369 = vmatpush1.msra.mxu0 0.0
        %1370 = vmatprep.subr.mxu0 0.0
        %1371 = vmatpush1.msra.mxu0 0.0
        %1372 = vmatprep.subr.mxu0 0.0
        %1373 = vmatpush1.msra.mxu0 0.0
        %1374 = vmatprep.subr.mxu0 0.0
        %1375 = vmatpush1.msra.mxu0 0.0
        %1376 = vmatprep.mubr.f32.mxu0 0.0
        %1377 = vmatmul.mubr.f32.gmra.mrb[0].mxu0 %v1301
        %v1378 = vpop.f32.mrb[0].mxu0
        %v1379 = vadd.f32 0.0, %v1378
        %v1380 = vpop.f32.mrb[0].mxu0
        %1381 = vmatprep.mubr.f32.mxu0 0.0
        %1382 = vmatmul.mubr.f32.gmra.mrb[0].mxu0 %v1304
        %v1383 = vpop.f32.mrb[0].mxu0
        %v1384 = vadd.f32 0.0, %v1383
        %v1385 = vpop.f32.mrb[0].mxu0
        %1386 = vmatprep.mubr.f32.mxu0 0.0
        %1387 = vmatmul.mubr.f32.gmra.mrb[0].mxu0 %v1307
        %v1388 = vpop.f32.mrb[0].mxu0
        %v1389 = vadd.f32 0.0, %v1388
        %v1390 = vpop.f32.mrb[0].mxu0
        %1391 = vmatprep.mubr.f32.mxu0 0.0
        %1392 = vmatmul.mubr.f32.gmra.mrb[0].mxu0 %v1310
        %v1393 = vpop.f32.mrb[0].mxu0
        %v1394 = vadd.f32 0.0, %v1393
        %v1395 = vpop.f32.mrb[0].mxu0
        %1396 = vdwg.mxu0
        %v1397 = vrcp.pop %v1278
        %v1398 = vrcp.pop %v1281
        %v1399 = vrcp.pop %v1284
        %v1400 = vrcp.pop %v1287
        %v1401 = vmul.f32 %v1379, %v1397
        %v1402 = vmul.f32 %v1384, %v1398
        %v1403 = vmul.f32 %v1389, %v1399
        %v1404 = vmul.f32 %v1394, %v1400
        %v1406 = vsel %vm399, %v1401, 0
        %v1409 = vsel %vm399, %v1402, 0
        %v1412 = vsel %vm399, %v1403, 0
        %v1415 = vsel %vm399, %v1404, 0
        %1417 = vmatprep.subr.mxu0 0.0
        %1418 = vmatpush1.msra.mxu0 %v269
        %1419 = vmatprep.subr.mxu0 0.0
        %1420 = vmatpush1.msra.mxu0 %v270
        %1421 = vmatprep.subr.mxu0 0.0
        %1422 = vmatpush1.msra.mxu0 0.0
        %1423 = vmatprep.subr.mxu0 0.0
        %1424 = vmatpush1.msra.mxu0 0.0
        %1425 = vmatprep.subr.mxu0 0.0
        %1426 = vmatpush1.msra.mxu0 0.0
        %1427 = vmatprep.subr.mxu0 0.0
        %1428 = vmatpush1.msra.mxu0 0.0
        %1429 = vmatprep.subr.mxu0 0.0
        %1430 = vmatpush1.msra.mxu0 0.0
        %1431 = vmatprep.subr.mxu0 0.0
        %1432 = vmatpush1.msra.mxu0 0.0
        %1433 = vmatprep.subr.mxu0 0.0
        %1434 = vmatpush1.msra.mxu0 0.0
        %1435 = vmatprep.subr.mxu0 0.0
        %1436 = vmatpush1.msra.mxu0 0.0
        %1437 = vmatprep.subr.mxu0 0.0
        %1438 = vmatpush1.msra.mxu0 0.0
        %1439 = vmatprep.subr.mxu0 0.0
        %1440 = vmatpush1.msra.mxu0 0.0
        %1441 = vmatprep.subr.mxu0 0.0
        %1442 = vmatpush1.msra.mxu0 0.0
        %1443 = vmatprep.subr.mxu0 0.0
        %1444 = vmatpush1.msra.mxu0 0.0
        %1445 = vmatprep.subr.mxu0 0.0
        %1446 = vmatpush1.msra.mxu0 0.0
        %1447 = vmatprep.subr.mxu0 0.0
        %1448 = vmatpush1.msra.mxu0 0.0
        %1449 = vmatprep.subr.mxu0 0.0
        %1450 = vmatpush1.msra.mxu0 0.0
        %1451 = vmatprep.subr.mxu0 0.0
        %1452 = vmatpush1.msra.mxu0 0.0
        %1453 = vmatprep.subr.mxu0 0.0
        %1454 = vmatpush1.msra.mxu0 0.0
        %1455 = vmatprep.subr.mxu0 0.0
        %1456 = vmatpush1.msra.mxu0 0.0
        %1457 = vmatprep.subr.mxu0 0.0
        %1458 = vmatpush1.msra.mxu0 0.0
        %1459 = vmatprep.subr.mxu0 0.0
        %1460 = vmatpush1.msra.mxu0 0.0
        %1461 = vmatprep.subr.mxu0 0.0
        %1462 = vmatpush1.msra.mxu0 0.0
        %1463 = vmatprep.subr.mxu0 0.0
        %1464 = vmatpush1.msra.mxu0 0.0
        %1465 = vmatprep.subr.mxu0 0.0
        %1466 = vmatpush1.msra.mxu0 0.0
        %1467 = vmatprep.subr.mxu0 0.0
        %1468 = vmatpush1.msra.mxu0 0.0
        %1469 = vmatprep.subr.mxu0 0.0
        %1470 = vmatpush1.msra.mxu0 0.0
        %1471 = vmatprep.subr.mxu0 0.0
        %1472 = vmatpush1.msra.mxu0 0.0
        %1473 = vmatprep.subr.mxu0 0.0
        %1474 = vmatpush1.msra.mxu0 0.0
        %1475 = vmatprep.subr.mxu0 0.0
        %1476 = vmatpush1.msra.mxu0 0.0
        %1477 = vmatprep.subr.mxu0 0.0
        %1478 = vmatpush1.msra.mxu0 0.0
        %1479 = vmatprep.subr.mxu0 0.0
        %1480 = vmatpush1.msra.mxu0 0.0
        %1481 = vmatprep.mubr.f32.mxu0 0.0
        %1482 = vmatmul.mubr.f32.gmra.mrb[0].mxu0 %v1406
        %v1483 = vpop.f32.mrb[0].mxu0
        %v1484 = vadd.f32 0.0, %v1483
        %v1485 = vpop.f32.mrb[0].mxu0
        %1486 = vmatprep.mubr.f32.mxu0 0.0
        %1487 = vmatmul.mubr.f32.gmra.mrb[0].mxu0 %v1409
        %v1488 = vpop.f32.mrb[0].mxu0
        %v1489 = vadd.f32 0.0, %v1488
        %v1490 = vpop.f32.mrb[0].mxu0
        %1491 = vmatprep.mubr.f32.mxu0 0.0
        %1492 = vmatmul.mubr.f32.gmra.mrb[0].mxu0 %v1412
        %v1493 = vpop.f32.mrb[0].mxu0
        %v1494 = vadd.f32 0.0, %v1493
        %v1495 = vpop.f32.mrb[0].mxu0
        %1496 = vmatprep.mubr.f32.mxu0 0.0
        %1497 = vmatmul.mubr.f32.gmra.mrb[0].mxu0 %v1415
        %v1498 = vpop.f32.mrb[0].mxu0
        %v1499 = vadd.f32 0.0, %v1498
        %v1500 = vpop.f32.mrb[0].mxu0
        %1501 = vdwg.mxu0
        %v1502 = vadd.f32 %v1109, %v1484
        %v1503 = vadd.f32 %v1114, %v1489
        %v1504 = vadd.f32 %v1119, %v1494
        %v1505 = vadd.f32 %v1124, %v1499
        %1506 = vrot.lane.b32.xlu0 %v354, 80
        %v1507 = vpop.permute.xlu0 %1506
        %1508 = vrot.lane.b32.xlu0 %v360, 80
        %v1509 = vpop.permute.xlu0 %1508
        %1510 = vrot.lane.b32.xlu0 %v366, 80
        %v1511 = vpop.permute.xlu0 %1510
        %1512 = vrot.lane.b32.xlu0 %v372, 80
        %v1513 = vpop.permute.xlu0 %1512
        %1514 = vrot.lane.b32.xlu0 %v354, 16
        %v1515 = vpop.permute.xlu0 %1514
        %1516 = vrot.lane.b32.xlu0 %v360, 16
        %v1517 = vpop.permute.xlu0 %1516
        %1518 = vrot.lane.b32.xlu0 %v366, 16
        %v1519 = vpop.permute.xlu0 %1518
        %1520 = vrot.lane.b32.xlu0 %v372, 16
        %v1521 = vpop.permute.xlu0 %1520
        %v1522 = vsel %vm399, %v1507, 0
        %v1524 = vsel %vm399, %v1509, 0
        %v1526 = vsel %vm399, %v1511, 0
        %v1528 = vsel %vm399, %v1513, 0
        %v1530 = vsel %vm399, %v1515, 0
        %v1532 = vsel %vm399, %v1517, 0
        %v1534 = vsel %vm399, %v1519, 0
        %v1536 = vsel %vm399, %v1521, 0
        %1538 = vmatprep.subr.mxu0 0.0
        %1539 = vmatpush1.xpose.msra.mxu0 %v1530
        %1540 = vmatprep.subr.mxu0 0.0
        %1541 = vmatpush1.xpose.msra.mxu0 %v1532
        %1542 = vmatprep.subr.mxu0 0.0
        %1543 = vmatpush1.xpose.msra.mxu0 %v1534
        %1544 = vmatprep.subr.mxu0 0.0
        %1545 = vmatpush1.xpose.msra.mxu0 %v1536
        %1546 = vmatprep.subr.mxu0 0.0
        %1547 = vmatpush1.xpose.msra.mxu0 0.0
        %1548 = vmatprep.subr.mxu0 0.0
        %1549 = vmatpush1.xpose.msra.mxu0 0.0
        %1550 = vmatprep.subr.mxu0 0.0
        %1551 = vmatpush1.xpose.msra.mxu0 0.0
        %1552 = vmatprep.subr.mxu0 0.0
        %1553 = vmatpush1.xpose.msra.mxu0 0.0
        %1554 = vmatprep.subr.mxu0 0.0
        %1555 = vmatpush1.xpose.msra.mxu0 0.0
        %1556 = vmatprep.subr.mxu0 0.0
        %1557 = vmatpush1.xpose.msra.mxu0 0.0
        %1558 = vmatprep.subr.mxu0 0.0
        %1559 = vmatpush1.xpose.msra.mxu0 0.0
        %1560 = vmatprep.subr.mxu0 0.0
        %1561 = vmatpush1.xpose.msra.mxu0 0.0
        %1562 = vmatprep.subr.mxu0 0.0
        %1563 = vmatpush1.xpose.msra.mxu0 0.0
        %1564 = vmatprep.subr.mxu0 0.0
        %1565 = vmatpush1.xpose.msra.mxu0 0.0
        %1566 = vmatprep.subr.mxu0 0.0
        %1567 = vmatpush1.xpose.msra.mxu0 0.0
        %1568 = vmatprep.subr.mxu0 0.0
        %1569 = vmatpush1.xpose.msra.mxu0 0.0
        %1570 = vmatprep.subr.mxu0 0.0
        %1571 = vmatpush1.xpose.msra.mxu0 0.0
        %1572 = vmatprep.subr.mxu0 0.0
        %1573 = vmatpush1.xpose.msra.mxu0 0.0
        %1574 = vmatprep.subr.mxu0 0.0
        %1575 = vmatpush1.xpose.msra.mxu0 0.0
        %1576 = vmatprep.subr.mxu0 0.0
        %1577 = vmatpush1.xpose.msra.mxu0 0.0
        %1578 = vmatprep.subr.mxu0 0.0
        %1579 = vmatpush1.xpose.msra.mxu0 0.0
        %1580 = vmatprep.subr.mxu0 0.0
        %1581 = vmatpush1.xpose.msra.mxu0 0.0
        %1582 = vmatprep.subr.mxu0 0.0
        %1583 = vmatpush1.xpose.msra.mxu0 0.0
        %1584 = vmatprep.subr.mxu0 0.0
        %1585 = vmatpush1.xpose.msra.mxu0 0.0
        %1586 = vmatprep.subr.mxu0 0.0
        %1587 = vmatpush1.xpose.msra.mxu0 0.0
        %1588 = vmatprep.subr.mxu0 0.0
        %1589 = vmatpush1.xpose.msra.mxu0 0.0
        %1590 = vmatprep.subr.mxu0 0.0
        %1591 = vmatpush1.xpose.msra.mxu0 0.0
        %1592 = vmatprep.subr.mxu0 0.0
        %1593 = vmatpush1.xpose.msra.mxu0 0.0
        %1594 = vmatprep.subr.mxu0 0.0
        %1595 = vmatpush1.xpose.msra.mxu0 0.0
        %1596 = vmatprep.subr.mxu0 0.0
        %1597 = vmatpush1.xpose.msra.mxu0 0.0
        %1598 = vmatprep.subr.mxu0 0.0
        %1599 = vmatpush1.xpose.msra.mxu0 0.0
        %1600 = vmatprep.subr.mxu0 0.0
        %1601 = vmatpush1.xpose.msra.mxu0 0.0
        %1602 = vmatprep.mubr.f32.mxu0 0.0
        %1603 = vmatmul.mubr.f32.gmra.mrb[0].mxu0 %v1522
        %v1604 = vpop.f32.mrb[0].mxu0
        %v1605 = vadd.f32 0.0, %v1604
        %v1606 = vpop.f32.mrb[0].mxu0
        %1607 = vmatprep.mubr.f32.mxu0 0.0
        %1608 = vmatmul.mubr.f32.gmra.mrb[0].mxu0 %v1524
        %v1609 = vpop.f32.mrb[0].mxu0
        %v1610 = vadd.f32 0.0, %v1609
        %v1611 = vpop.f32.mrb[0].mxu0
        %1612 = vmatprep.mubr.f32.mxu0 0.0
        %1613 = vmatmul.mubr.f32.gmra.mrb[0].mxu0 %v1526
        %v1614 = vpop.f32.mrb[0].mxu0
        %v1615 = vadd.f32 0.0, %v1614
        %v1616 = vpop.f32.mrb[0].mxu0
        %1617 = vmatprep.mubr.f32.mxu0 0.0
        %1618 = vmatmul.mubr.f32.gmra.mrb[0].mxu0 %v1528
        %v1619 = vpop.f32.mrb[0].mxu0
        %v1620 = vadd.f32 0.0, %v1619
        %v1621 = vpop.f32.mrb[0].mxu0
        %1622 = vdwg.mxu0
        %v1623 = vmul.f32 %v1605, 0.125
        %v1624 = vmul.f32 %v1610, 0.125
        %v1625 = vmul.f32 %v1615, 0.125
        %v1626 = vmul.f32 %v1620, 0.125
        %v1627 = vsel %vm383, %v1623, -1e+30
        %v1628 = vsel %vm384, %v1624, -1e+30
        %v1629 = vsel %vm385, %v1625, -1e+30
        %v1630 = vsel %vm386, %v1626, -1e+30
        %v1631 = vsel %vm509, %v1627, -inf
        %1632 = vmax.xlane.f32.xlu0 %v1631
        %v1633 = vpop.xlane.xlu0 %1632
        %v1634 = vsel %vm509, %v1628, -inf
        %1635 = vmax.xlane.f32.xlu0 %v1634
        %v1636 = vpop.xlane.xlu0 %1635
        %v1637 = vsel %vm509, %v1629, -inf
        %1638 = vmax.xlane.f32.xlu0 %v1637
        %v1639 = vpop.xlane.xlu0 %1638
        %v1640 = vsel %vm509, %v1630, -inf
        %1641 = vmax.xlane.f32.xlu0 %v1640
        %v1642 = vpop.xlane.xlu0 %1641
        %v1643 = vsub.f32 %v1627, %v1633
        %v1644 = vsub.f32 %v1628, %v1636
        %v1645 = vsub.f32 %v1629, %v1639
        %v1646 = vsub.f32 %v1630, %v1642
        %v1647 = vmul.f32 %v1643, 1.442695
        %v1648 = vpow.pop %v1647
        %v1649 = vmul.f32 %v1644, 1.442695
        %v1650 = vpow.pop %v1649
        %v1651 = vmul.f32 %v1645, 1.442695
        %v1652 = vpow.pop %v1651
        %v1653 = vmul.f32 %v1646, 1.442695
        %v1654 = vpow.pop %v1653
        %v1655 = vsel %vm509, %v1648, 0.0
        %1656 = vadd.xlane.f32.xlu0 %v1655
        %v1657 = vpop.xlane.xlu0 %1656
        %v1658 = vsel %vm509, %v1650, 0.0
        %1659 = vadd.xlane.f32.xlu0 %v1658
        %v1660 = vpop.xlane.xlu0 %1659
        %v1661 = vsel %vm509, %v1652, 0.0
        %1662 = vadd.xlane.f32.xlu0 %v1661
        %v1663 = vpop.xlane.xlu0 %1662
        %v1664 = vsel %vm509, %v1654, 0.0
        %1665 = vadd.xlane.f32.xlu0 %v1664
        %v1666 = vpop.xlane.xlu0 %1665
        %1667 = vrot.lane.b32.xlu0 %v356, 80
        %v1668 = vpop.permute.xlu0 %1667
        %1669 = vrot.lane.b32.xlu0 %v362, 80
        %v1670 = vpop.permute.xlu0 %1669
        %1671 = vrot.lane.b32.xlu0 %v368, 80
        %v1672 = vpop.permute.xlu0 %1671
        %1673 = vrot.lane.b32.xlu0 %v374, 80
        %v1674 = vpop.permute.xlu0 %1673
        %v1680 = vsel %vm509, %v1648, 0
        %v1683 = vsel %vm509, %v1650, 0
        %v1686 = vsel %vm509, %v1652, 0
        %v1689 = vsel %vm509, %v1654, 0
        %1691 = vmatprep.subr.mxu0 0.0
        %1692 = vmatpush1.msra.mxu0 %v1668
        %1693 = vmatprep.subr.mxu0 0.0
        %1694 = vmatpush1.msra.mxu0 %v1670
        %1695 = vmatprep.subr.mxu0 0.0
        %1696 = vmatpush1.msra.mxu0 %v1672
        %1697 = vmatprep.subr.mxu0 0.0
        %1698 = vmatpush1.msra.mxu0 %v1674
        %1699 = vmatprep.subr.mxu0 0.0
        %1700 = vmatpush1.msra.mxu0 0.0
        %1701 = vmatprep.subr.mxu0 0.0
        %1702 = vmatpush1.msra.mxu0 0.0
        %1703 = vmatprep.subr.mxu0 0.0
        %1704 = vmatpush1.msra.mxu0 0.0
        %1705 = vmatprep.subr.mxu0 0.0
        %1706 = vmatpush1.msra.mxu0 0.0
        %1707 = vmatprep.subr.mxu0 0.0
        %1708 = vmatpush1.msra.mxu0 0.0
        %1709 = vmatprep.subr.mxu0 0.0
        %1710 = vmatpush1.msra.mxu0 0.0
        %1711 = vmatprep.subr.mxu0 0.0
        %1712 = vmatpush1.msra.mxu0 0.0
        %1713 = vmatprep.subr.mxu0 0.0
        %1714 = vmatpush1.msra.mxu0 0.0
        %1715 = vmatprep.subr.mxu0 0.0
        %1716 = vmatpush1.msra.mxu0 0.0
        %1717 = vmatprep.subr.mxu0 0.0
        %1718 = vmatpush1.msra.mxu0 0.0
        %1719 = vmatprep.subr.mxu0 0.0
        %1720 = vmatpush1.msra.mxu0 0.0
        %1721 = vmatprep.subr.mxu0 0.0
        %1722 = vmatpush1.msra.mxu0 0.0
        %1723 = vmatprep.subr.mxu0 0.0
        %1724 = vmatpush1.msra.mxu0 0.0
        %1725 = vmatprep.subr.mxu0 0.0
        %1726 = vmatpush1.msra.mxu0 0.0
        %1727 = vmatprep.subr.mxu0 0.0
        %1728 = vmatpush1.msra.mxu0 0.0
        %1729 = vmatprep.subr.mxu0 0.0
        %1730 = vmatpush1.msra.mxu0 0.0
        %1731 = vmatprep.subr.mxu0 0.0
        %1732 = vmatpush1.msra.mxu0 0.0
        %1733 = vmatprep.subr.mxu0 0.0
        %1734 = vmatpush1.msra.mxu0 0.0
        %1735 = vmatprep.subr.mxu0 0.0
        %1736 = vmatpush1.msra.mxu0 0.0
        %1737 = vmatprep.subr.mxu0 0.0
        %1738 = vmatpush1.msra.mxu0 0.0
        %1739 = vmatprep.subr.mxu0 0.0
        %1740 = vmatpush1.msra.mxu0 0.0
        %1741 = vmatprep.subr.mxu0 0.0
        %1742 = vmatpush1.msra.mxu0 0.0
        %1743 = vmatprep.subr.mxu0 0.0
        %1744 = vmatpush1.msra.mxu0 0.0
        %1745 = vmatprep.subr.mxu0 0.0
        %1746 = vmatpush1.msra.mxu0 0.0
        %1747 = vmatprep.subr.mxu0 0.0
        %1748 = vmatpush1.msra.mxu0 0.0
        %1749 = vmatprep.subr.mxu0 0.0
        %1750 = vmatpush1.msra.mxu0 0.0
        %1751 = vmatprep.subr.mxu0 0.0
        %1752 = vmatpush1.msra.mxu0 0.0
        %1753 = vmatprep.subr.mxu0 0.0
        %1754 = vmatpush1.msra.mxu0 0.0
        %1755 = vmatprep.mubr.f32.mxu0 0.0
        %1756 = vmatmul.mubr.f32.gmra.mrb[0].mxu0 %v1680
        %v1757 = vpop.f32.mrb[0].mxu0
        %v1758 = vadd.f32 0.0, %v1757
        %v1759 = vpop.f32.mrb[0].mxu0
        %1760 = vmatprep.mubr.f32.mxu0 0.0
        %1761 = vmatmul.mubr.f32.gmra.mrb[0].mxu0 %v1683
        %v1762 = vpop.f32.mrb[0].mxu0
        %v1763 = vadd.f32 0.0, %v1762
        %v1764 = vpop.f32.mrb[0].mxu0
        %1765 = vmatprep.mubr.f32.mxu0 0.0
        %1766 = vmatmul.mubr.f32.gmra.mrb[0].mxu0 %v1686
        %v1767 = vpop.f32.mrb[0].mxu0
        %v1768 = vadd.f32 0.0, %v1767
        %v1769 = vpop.f32.mrb[0].mxu0
        %1770 = vmatprep.mubr.f32.mxu0 0.0
        %1771 = vmatmul.mubr.f32.gmra.mrb[0].mxu0 %v1689
        %v1772 = vpop.f32.mrb[0].mxu0
        %v1773 = vadd.f32 0.0, %v1772
        %v1774 = vpop.f32.mrb[0].mxu0
        %1775 = vdwg.mxu0
        %v1776 = vrcp.pop %v1657
        %v1777 = vrcp.pop %v1660
        %v1778 = vrcp.pop %v1663
        %v1779 = vrcp.pop %v1666
        %v1780 = vmul.f32 %v1758, %v1776
        %v1781 = vmul.f32 %v1763, %v1777
        %v1782 = vmul.f32 %v1768, %v1778
        %v1783 = vmul.f32 %v1773, %v1779
        %v1785 = vsel %vm399, %v1780, 0
        %v1788 = vsel %vm399, %v1781, 0
        %v1791 = vsel %vm399, %v1782, 0
        %v1794 = vsel %vm399, %v1783, 0
        %1796 = vmatprep.subr.mxu0 0.0
        %1797 = vmatpush1.msra.mxu0 %v271
        %1798 = vmatprep.subr.mxu0 0.0
        %1799 = vmatpush1.msra.mxu0 %v272
        %1800 = vmatprep.subr.mxu0 0.0
        %1801 = vmatpush1.msra.mxu0 0.0
        %1802 = vmatprep.subr.mxu0 0.0
        %1803 = vmatpush1.msra.mxu0 0.0
        %1804 = vmatprep.subr.mxu0 0.0
        %1805 = vmatpush1.msra.mxu0 0.0
        %1806 = vmatprep.subr.mxu0 0.0
        %1807 = vmatpush1.msra.mxu0 0.0
        %1808 = vmatprep.subr.mxu0 0.0
        %1809 = vmatpush1.msra.mxu0 0.0
        %1810 = vmatprep.subr.mxu0 0.0
        %1811 = vmatpush1.msra.mxu0 0.0
        %1812 = vmatprep.subr.mxu0 0.0
        %1813 = vmatpush1.msra.mxu0 0.0
        %1814 = vmatprep.subr.mxu0 0.0
        %1815 = vmatpush1.msra.mxu0 0.0
        %1816 = vmatprep.subr.mxu0 0.0
        %1817 = vmatpush1.msra.mxu0 0.0
        %1818 = vmatprep.subr.mxu0 0.0
        %1819 = vmatpush1.msra.mxu0 0.0
        %1820 = vmatprep.subr.mxu0 0.0
        %1821 = vmatpush1.msra.mxu0 0.0
        %1822 = vmatprep.subr.mxu0 0.0
        %1823 = vmatpush1.msra.mxu0 0.0
        %1824 = vmatprep.subr.mxu0 0.0
        %1825 = vmatpush1.msra.mxu0 0.0
        %1826 = vmatprep.subr.mxu0 0.0
        %1827 = vmatpush1.msra.mxu0 0.0
        %1828 = vmatprep.subr.mxu0 0.0
        %1829 = vmatpush1.msra.mxu0 0.0
        %1830 = vmatprep.subr.mxu0 0.0
        %1831 = vmatpush1.msra.mxu0 0.0
        %1832 = vmatprep.subr.mxu0 0.0
        %1833 = vmatpush1.msra.mxu0 0.0
        %1834 = vmatprep.subr.mxu0 0.0
        %1835 = vmatpush1.msra.mxu0 0.0
        %1836 = vmatprep.subr.mxu0 0.0
        %1837 = vmatpush1.msra.mxu0 0.0
        %1838 = vmatprep.subr.mxu0 0.0
        %1839 = vmatpush1.msra.mxu0 0.0
        %1840 = vmatprep.subr.mxu0 0.0
        %1841 = vmatpush1.msra.mxu0 0.0
        %1842 = vmatprep.subr.mxu0 0.0
        %1843 = vmatpush1.msra.mxu0 0.0
        %1844 = vmatprep.subr.mxu0 0.0
        %1845 = vmatpush1.msra.mxu0 0.0
        %1846 = vmatprep.subr.mxu0 0.0
        %1847 = vmatpush1.msra.mxu0 0.0
        %1848 = vmatprep.subr.mxu0 0.0
        %1849 = vmatpush1.msra.mxu0 0.0
        %1850 = vmatprep.subr.mxu0 0.0
        %1851 = vmatpush1.msra.mxu0 0.0
        %1852 = vmatprep.subr.mxu0 0.0
        %1853 = vmatpush1.msra.mxu0 0.0
        %1854 = vmatprep.subr.mxu0 0.0
        %1855 = vmatpush1.msra.mxu0 0.0
        %1856 = vmatprep.subr.mxu0 0.0
        %1857 = vmatpush1.msra.mxu0 0.0
        %1858 = vmatprep.subr.mxu0 0.0
        %1859 = vmatpush1.msra.mxu0 0.0
        %1860 = vmatprep.mubr.f32.mxu0 0.0
        %1861 = vmatmul.mubr.f32.gmra.mrb[0].mxu0 %v1785
        %v1862 = vpop.f32.mrb[0].mxu0
        %v1863 = vadd.f32 0.0, %v1862
        %v1864 = vpop.f32.mrb[0].mxu0
        %1865 = vmatprep.mubr.f32.mxu0 0.0
        %1866 = vmatmul.mubr.f32.gmra.mrb[0].mxu0 %v1788
        %v1867 = vpop.f32.mrb[0].mxu0
        %v1868 = vadd.f32 0.0, %v1867
        %v1869 = vpop.f32.mrb[0].mxu0
        %1870 = vmatprep.mubr.f32.mxu0 0.0
        %1871 = vmatmul.mubr.f32.gmra.mrb[0].mxu0 %v1791
        %v1872 = vpop.f32.mrb[0].mxu0
        %v1873 = vadd.f32 0.0, %v1872
        %v1874 = vpop.f32.mrb[0].mxu0
        %1875 = vmatprep.mubr.f32.mxu0 0.0
        %1876 = vmatmul.mubr.f32.gmra.mrb[0].mxu0 %v1794
        %v1877 = vpop.f32.mrb[0].mxu0
        %v1878 = vadd.f32 0.0, %v1877
        %v1879 = vpop.f32.mrb[0].mxu0
        %1880 = vdwg.mxu0
        %v1881 = vadd.f32 %v1502, %v1863
        %v1882 = vadd.f32 %v1503, %v1868
        %v1883 = vadd.f32 %v1504, %v1873
        %v1884 = vadd.f32 %v1505, %v1878
        %v1886 = vlaneseq
        %v1887 = vshrl.u32 %v1886, 7
        %v1888 = vsub.s32 0, %v1887
        %v1889 = vrot.slane %v273, %v1888
        %v1891 = vadd.f32 %v1881, %v1889
        %v1892 = vadd.f32 %v1882, %v1889
        %v1893 = vadd.f32 %v1883, %v1889
        %v1894 = vadd.f32 %v1884, %v1889
        %1895 = vst.msk [vmem:[%s244] sm:$0xff] %vm274, %v1891
        %1896 = vst.msk [vmem:[%s244 + $0x8] sm:$0xff] %vm274, %v1892
        %1897 = vst.msk [vmem:[%s244 + $0x10] sm:$0xff] %vm274, %v1893
        %1898 = vst.msk [vmem:[%s244 + $0x18] sm:$0xff] %vm274, %v1894
        %s1899 = sand.u32 %s119, 1
        %s1900 = scalar_lea.sflag [#allocation4], %s1899
        %s1901 = sand.u32 %s119, 1
        %s1902 = smul.addr %s1901, 32
        %s1903 = scalar_lea.vmem [#allocation8], %s1902
        // Predicated region
        $region49: #{multi_head_attention.1} parent=35 // pred_check
          %p1904 = pneg %p129
        $region50: #{multi_head_attention.1} parent=35 // pred_check_branch
          %1906 = sbr.rel (%p1904) target = $region52
        $region51: #{multi_head_attention.1} parent=35 // pred_region
          %s1908 = ssub.s32 512, 512
          %1909 = vsyncadd %s1900, %s1908
          %s1910 = smul.addr %s22, 4
          %s1911 = smul.addr %s1910, 128
          %s1912 = scalar_lea.hbm %s4, %s1911
          %s1913 = sshll.u32 %s1903, 4
          %s1914 = int_to_ptr.vmem [resolvable:$true] %s1913
          %1919 = dma.vmem_to_hbm [thread:$0]  %s1914, 512, %s1912, %s1900, 128, 128, 8
        $region52: #{multi_head_attention.1} parent=35 // pred_fallthru
          _
      $region36: #{multi_head_attention.1} parent=5 // pred_fallthru
        _
      %p1920 = scmp.le.s32.totalorder 2, %s17
      // Predicated region
      $region53: #{multi_head_attention.1} parent=5 // pred_check
        %p1921 = pneg %p1920
      $region54: #{multi_head_attention.1} parent=5 // pred_check_branch
        %1923 = sbr.rel (%p1921) target = $region56
      $region55: #{multi_head_attention.1} parent=5 // pred_region
        %s1924 = ssub.s32 %s17, 2
        // Predicated region
        $region57: #{multi_head_attention.1} parent=55 // pred_check
          %p1925 = pneg %p135
        $region58: #{multi_head_attention.1} parent=55 // pred_check_branch
          %1927 = sbr.rel (%p1925) target = $region60
        $region59: #{multi_head_attention.1} parent=55 // pred_region
          %s1928 = sand.u32 %s120, 1
          %s1929 = scalar_lea.sflag [#allocation4], %s1928
          %s1930 = sand.u32 %s120, 1
          %s1931 = smul.addr %s1930, 32
          %s1932 = scalar_lea.vmem [#allocation8], %s1931
          %1933 = dma.done %s1929, 512
        $region60: #{multi_head_attention.1} parent=55 // pred_fallthru
          _
      $region56: #{multi_head_attention.1} parent=5 // pred_fallthru
        _
    $region6: #{multi_head_attention.1} parent=1 // loop_footer
      %s21 = sadd.s32 1, %s17
    $region7: #{multi_head_attention.1} parent=1 // loop_footer_branch
      %16 = sbr.rel target = $region3
    $region8: #{multi_head_attention.1} parent=1 // loop_exit
      _
    %1934 = vsyncpa [#allocation3], 1
    %s1935 = scalar_lea.sflag [#allocation3], 1
    %1936 = vsyncpa %s1935, 1
    %1937 = vsyncpa [#allocation6], 1
    %1938 = vsyncpa [#allocation4], 1
    %s1939 = scalar_lea.sflag [#allocation4], 1
    %1940 = vsyncpa %s1939, 1

</llo_original>
